<compile_context>
chip_gen: v5e
topology: v5e:2x2
jax: 0.10.0
libtpu: 0.0.40
codegen_flags: <defaults>
</compile_context>

<pallas_src>
import math
import functools

import jax
import jax.numpy as jnp
from jax import lax
from jax.experimental import pallas as pl
from jax.experimental.pallas import tpu as pltpu


def _layer_norm(x, gamma, beta, eps):
    mean = jnp.mean(x, axis=-1, keepdims=True)
    var = jnp.mean(jnp.square(x - mean), axis=-1, keepdims=True)
    return (x - mean) * lax.rsqrt(var + eps) * gamma + beta


def _encoder_layer_kernel(src_ref, mask_ref,
                          wq_ref, bq_ref, wk_ref, bk_ref, wv_ref, bv_ref,
                          wo_ref, bo_ref,
                          g1_ref, be1_ref,
                          w1_ref, bf1_ref, w2_ref, bf2_ref,
                          g2_ref, be2_ref,
                          o_ref, *, n_heads, eps):
    x = src_ref[0].astype(jnp.float32)                  # (S, D)
    S, D = x.shape
    d_k = D // n_heads
    scale = 1.0 / math.sqrt(d_k)
    mask = mask_ref[...].astype(jnp.float32)            # (S, S), additive

    # ---- multi-head self-attention (QKV proj + SDPA + output proj) ------
    q = jnp.dot(x, wq_ref[...], preferred_element_type=jnp.float32) + bq_ref[...]
    k = jnp.dot(x, wk_ref[...], preferred_element_type=jnp.float32) + bk_ref[...]
    v = jnp.dot(x, wv_ref[...], preferred_element_type=jnp.float32) + bv_ref[...]

    head_outs = []
    for h in range(n_heads):                            # static, unrolled head loop
        sl = slice(h * d_k, (h + 1) * d_k)
        qh, kh, vh = q[:, sl], k[:, sl], v[:, sl]
        # scores = qh @ kh.T (contract d_k of both operands; no explicit transpose)
        scores = lax.dot_general(qh, kh, (((1,), (1,)), ((), ())),
                                 preferred_element_type=jnp.float32)
        scores = scores * scale + mask
        scores = scores - jnp.max(scores, axis=-1, keepdims=True)
        p = jnp.exp(scores)
        p = p / jnp.sum(p, axis=-1, keepdims=True)
        head_outs.append(jnp.dot(p, vh, preferred_element_type=jnp.float32))
    attn = jnp.concatenate(head_outs, axis=-1)          # (S, D)
    attn = jnp.dot(attn, wo_ref[...], preferred_element_type=jnp.float32) + bo_ref[...]

    # residual + LayerNorm 1   (dropout1 is identity in eval mode)
    x1 = _layer_norm(x + attn, g1_ref[...], be1_ref[...], eps)

    # ---- position-wise feed-forward (internal dropout identity in eval) --
    h1 = jnp.dot(x1, w1_ref[...], preferred_element_type=jnp.float32) + bf1_ref[...]
    h1 = jnp.maximum(h1, 0.0)
    ff = jnp.dot(h1, w2_ref[...], preferred_element_type=jnp.float32) + bf2_ref[...]

    # residual + LayerNorm 2   (dropout2 is identity in eval mode)
    x2 = _layer_norm(x1 + ff, g2_ref[...], be2_ref[...], eps)

    o_ref[...] = x2[None, :, :].astype(o_ref.dtype)
    # TODO(synk): training-mode dropout (pltpu.prng_seed + prng_random_bits with an
    # integer keep-threshold) is not wired in; this kernel implements module.eval().


def encoder_layer(src, src_mask, params, *, n_heads, eps=1e-5):
    """Fused EncoderLayer forward (eval mode). src: [B, S, D], src_mask: [S, S]."""
    B, S, D = src.shape
    F = params["w1"].shape[1]

    def rep(shape):  # weight / mask spec: same block for every grid step
        nd = len(shape)
        return pl.BlockSpec(shape, lambda b, _nd=nd: (0,) * _nd)

    in_specs = [
        pl.BlockSpec((1, S, D), lambda b: (b, 0, 0)),   # src
        rep((S, S)),                                    # additive attention mask
        rep((D, D)), rep((1, D)),                       # W_q, b_q
        rep((D, D)), rep((1, D)),                       # W_k, b_k
        rep((D, D)), rep((1, D)),                       # W_v, b_v
        rep((D, D)), rep((1, D)),                       # W_o, b_o
        rep((1, D)), rep((1, D)),                       # norm1 gamma, beta
        rep((D, F)), rep((1, F)),                       # FFN linear1
        rep((F, D)), rep((1, D)),                       # FFN linear2
        rep((1, D)), rep((1, D)),                       # norm2 gamma, beta
    ]

    flops = B * (4 * 2 * S * D * D          # QKV + output projections
                 + 2 * 2 * S * S * D        # scores + attn @ V over all heads
                 + 2 * 2 * S * D * F)       # FFN
    cost = pl.CostEstimate(
        flops=flops,
        transcendentals=B * n_heads * S * S + 2 * B * S,
        bytes_accessed=4 * (2 * B * S * D + 4 * D * D + 2 * D * F + S * S + 7 * D + F),
    )

    kernel = functools.partial(_encoder_layer_kernel, n_heads=n_heads, eps=eps)

    return pl.pallas_call(
        kernel,
        out_shape=jax.ShapeDtypeStruct((B, S, D), src.dtype),
        grid_spec=pltpu.PrefetchScalarGridSpec(
            num_scalar_prefetch=0,
            grid=(B,),
            in_specs=in_specs,
            out_specs=pl.BlockSpec((1, S, D), lambda b: (b, 0, 0)),
        ),
        compiler_params=pltpu.CompilerParams(
            dimension_semantics=("parallel",)),
        cost_estimate=cost,
    )(src, src_mask,
      params["wq"], params["bq"], params["wk"], params["bk"],
      params["wv"], params["bv"], params["wo"], params["bo"],
      params["g1"], params["be1"],
      params["w1"], params["bf1"], params["w2"], params["bf2"],
      params["g2"], params["be2"])


def encoder_layer_ref(src, mask, p, *, n_heads, eps=1e-5):
    """Plain-JAX reference mirroring the PyTorch EncoderLayer (eval mode)."""
    B, S, D = src.shape
    d_k = D // n_heads

    def ln(x, g, b):
        m = x.mean(-1, keepdims=True)
        var = ((x - m) ** 2).mean(-1, keepdims=True)
        return (x - m) * lax.rsqrt(var + eps) * g + b

    q = (src @ p["wq"] + p["bq"]).reshape(B, S, n_heads, d_k).transpose(0, 2, 1, 3)
    k = (src @ p["wk"] + p["bk"]).reshape(B, S, n_heads, d_k).transpose(0, 2, 1, 3)
    v = (src @ p["wv"] + p["bv"]).reshape(B, S, n_heads, d_k).transpose(0, 2, 1, 3)
    scores = q @ jnp.swapaxes(k, -1, -2) / math.sqrt(d_k) + mask
    attn = jax.nn.softmax(scores, axis=-1)
    ctx = (attn @ v).transpose(0, 2, 1, 3).reshape(B, S, D)
    a = ctx @ p["wo"] + p["bo"]
    x1 = ln(src + a, p["g1"], p["be1"])
    ff = jax.nn.relu(x1 @ p["w1"] + p["bf1"]) @ p["w2"] + p["bf2"]
    return ln(x1 + ff, p["g2"], p["be2"])


if __name__ == "__main__":
    B, S, D, H, F = 2, 8, 32, 4, 64

    key = jax.random.PRNGKey(0)
    ks = jax.random.split(key, 18)

    def rnd(k, shape, scale=0.1):
        return (scale * jax.random.normal(k, shape)).astype(jnp.float32)

    params = dict(
        wq=rnd(ks[0], (D, D)), bq=rnd(ks[1], (1, D)),
        wk=rnd(ks[2], (D, D)), bk=rnd(ks[3], (1, D)),
        wv=rnd(ks[4], (D, D)), bv=rnd(ks[5], (1, D)),
        wo=rnd(ks[6], (D, D)), bo=rnd(ks[7], (1, D)),
        g1=(1.0 + rnd(ks[8], (1, D))), be1=rnd(ks[9], (1, D)),
        w1=rnd(ks[10], (D, F)), bf1=rnd(ks[11], (1, F)),
        w2=rnd(ks[12], (F, D)), bf2=rnd(ks[13], (1, D)),
        g2=(1.0 + rnd(ks[14], (1, D))), be2=rnd(ks[15], (1, D)),
    )
    src = jax.random.normal(ks[16], (B, S, D), dtype=jnp.float32)
    # Additive attention mask (causal): 0 where attended, -1e9 elsewhere.
    mask = jnp.where(jnp.tril(jnp.ones((S, S), dtype=bool)), 0.0, -1e9).astype(jnp.float32)

    out = encoder_layer(src, mask, params, n_heads=H)
    out = jax.block_until_ready(out)

    ref = encoder_layer_ref(src, mask, params, n_heads=H)
    assert out.shape == (B, S, D) and out.dtype == jnp.float32
    assert jnp.allclose(out, ref, atol=1e-4, rtol=1e-4), float(jnp.max(jnp.abs(out - ref)))

    print("KERNEL_OK")
</pallas_src>

<mosaic_0001>
module attributes {stable_mosaic.version = 11 : i64} {
  func.func @_encoder_layer_kernel(%arg0: i32, %arg1: memref<1x8x32xf32, #tpu.memory_space<vmem>>, %arg2: memref<8x8xf32, #tpu.memory_space<vmem>>, %arg3: memref<32x32xf32, #tpu.memory_space<vmem>>, %arg4: memref<1x32xf32, #tpu.memory_space<vmem>>, %arg5: memref<32x32xf32, #tpu.memory_space<vmem>>, %arg6: memref<1x32xf32, #tpu.memory_space<vmem>>, %arg7: memref<32x32xf32, #tpu.memory_space<vmem>>, %arg8: memref<1x32xf32, #tpu.memory_space<vmem>>, %arg9: memref<32x32xf32, #tpu.memory_space<vmem>>, %arg10: memref<1x32xf32, #tpu.memory_space<vmem>>, %arg11: memref<1x32xf32, #tpu.memory_space<vmem>>, %arg12: memref<1x32xf32, #tpu.memory_space<vmem>>, %arg13: memref<32x64xf32, #tpu.memory_space<vmem>>, %arg14: memref<1x64xf32, #tpu.memory_space<vmem>>, %arg15: memref<64x32xf32, #tpu.memory_space<vmem>>, %arg16: memref<1x32xf32, #tpu.memory_space<vmem>>, %arg17: memref<1x32xf32, #tpu.memory_space<vmem>>, %arg18: memref<1x32xf32, #tpu.memory_space<vmem>>, %arg19: memref<1x8x32xf32, #tpu.memory_space<vmem>>) attributes {dimension_semantics = [#tpu.dimension_semantics<parallel>], iteration_bounds = array<i64: 2>, scalar_prefetch = 0 : i64, scratch_operands = 0 : i64, tpu.core_type = #tpu.core_type<tc>, window_params = [{transform_indices = @transform_0, window_bounds = array<i64: 1, 8, 32>}, {pipeline_mode = #tpu.pipeline_mode<synchronous>, transform_indices = @transform_1, window_bounds = array<i64: 8, 8>}, {pipeline_mode = #tpu.pipeline_mode<synchronous>, transform_indices = @transform_2, window_bounds = array<i64: 32, 32>}, {pipeline_mode = #tpu.pipeline_mode<synchronous>, transform_indices = @transform_3, window_bounds = array<i64: 1, 32>}, {pipeline_mode = #tpu.pipeline_mode<synchronous>, transform_indices = @transform_4, window_bounds = array<i64: 32, 32>}, {pipeline_mode = #tpu.pipeline_mode<synchronous>, transform_indices = @transform_5, window_bounds = array<i64: 1, 32>}, {pipeline_mode = #tpu.pipeline_mode<synchronous>, transform_indices = @transform_6, window_bounds = array<i64: 32, 32>}, {pipeline_mode = #tpu.pipeline_mode<synchronous>, transform_indices = @transform_7, window_bounds = array<i64: 1, 32>}, {pipeline_mode = #tpu.pipeline_mode<synchronous>, transform_indices = @transform_8, window_bounds = array<i64: 32, 32>}, {pipeline_mode = #tpu.pipeline_mode<synchronous>, transform_indices = @transform_9, window_bounds = array<i64: 1, 32>}, {pipeline_mode = #tpu.pipeline_mode<synchronous>, transform_indices = @transform_10, window_bounds = array<i64: 1, 32>}, {pipeline_mode = #tpu.pipeline_mode<synchronous>, transform_indices = @transform_11, window_bounds = array<i64: 1, 32>}, {pipeline_mode = #tpu.pipeline_mode<synchronous>, transform_indices = @transform_12, window_bounds = array<i64: 32, 64>}, {pipeline_mode = #tpu.pipeline_mode<synchronous>, transform_indices = @transform_13, window_bounds = array<i64: 1, 64>}, {pipeline_mode = #tpu.pipeline_mode<synchronous>, transform_indices = @transform_14, window_bounds = array<i64: 64, 32>}, {pipeline_mode = #tpu.pipeline_mode<synchronous>, transform_indices = @transform_15, window_bounds = array<i64: 1, 32>}, {pipeline_mode = #tpu.pipeline_mode<synchronous>, transform_indices = @transform_16, window_bounds = array<i64: 1, 32>}, {pipeline_mode = #tpu.pipeline_mode<synchronous>, transform_indices = @transform_17, window_bounds = array<i64: 1, 32>}, {transform_indices = @transform_18, window_bounds = array<i64: 1, 8, 32>}]} {
    %c0 = arith.constant 0 : index
    %c0_0 = arith.constant 0 : index
    %c0_1 = arith.constant 0 : index
    %0 = vector.load %arg1[%c0, %c0_0, %c0_1] : memref<1x8x32xf32, #tpu.memory_space<vmem>>, vector<1x8x32xf32>
    %1 = vector.shape_cast %0 : vector<1x8x32xf32> to vector<8x32xf32>
    %c0_2 = arith.constant 0 : index
    %c0_3 = arith.constant 0 : index
    %2 = vector.load %arg2[%c0_2, %c0_3] : memref<8x8xf32, #tpu.memory_space<vmem>>, vector<8x8xf32>
    %c0_4 = arith.constant 0 : index
    %c0_5 = arith.constant 0 : index
    %3 = vector.load %arg3[%c0_4, %c0_5] : memref<32x32xf32, #tpu.memory_space<vmem>>, vector<32x32xf32>
    %cst = arith.constant dense<0.000000e+00> : vector<8x32xf32>
    %4 = tpu.matmul %1, %3, %cst {dimension_numbers = #tpu.dot_dimension_numbers<[1], [0], [0], [1], [0, 0, 1, 1], [], []>} : vector<8x32xf32>, vector<32x32xf32>, vector<8x32xf32> -> vector<8x32xf32>
    %c0_6 = arith.constant 0 : index
    %c0_7 = arith.constant 0 : index
    %5 = vector.load %arg4[%c0_6, %c0_7] : memref<1x32xf32, #tpu.memory_space<vmem>>, vector<1x32xf32>
    %6 = vector.broadcast %5 : vector<1x32xf32> to vector<8x32xf32>
    %7 = arith.addf %4, %6 : vector<8x32xf32>
    %c0_8 = arith.constant 0 : index
    %c0_9 = arith.constant 0 : index
    %8 = vector.load %arg5[%c0_8, %c0_9] : memref<32x32xf32, #tpu.memory_space<vmem>>, vector<32x32xf32>
    %cst_10 = arith.constant dense<0.000000e+00> : vector<8x32xf32>
    %9 = tpu.matmul %1, %8, %cst_10 {dimension_numbers = #tpu.dot_dimension_numbers<[1], [0], [0], [1], [0, 0, 1, 1], [], []>} : vector<8x32xf32>, vector<32x32xf32>, vector<8x32xf32> -> vector<8x32xf32>
    %c0_11 = arith.constant 0 : index
    %c0_12 = arith.constant 0 : index
    %10 = vector.load %arg6[%c0_11, %c0_12] : memref<1x32xf32, #tpu.memory_space<vmem>>, vector<1x32xf32>
    %11 = vector.broadcast %10 : vector<1x32xf32> to vector<8x32xf32>
    %12 = arith.addf %9, %11 : vector<8x32xf32>
    %c0_13 = arith.constant 0 : index
    %c0_14 = arith.constant 0 : index
    %13 = vector.load %arg7[%c0_13, %c0_14] : memref<32x32xf32, #tpu.memory_space<vmem>>, vector<32x32xf32>
    %cst_15 = arith.constant dense<0.000000e+00> : vector<8x32xf32>
    %14 = tpu.matmul %1, %13, %cst_15 {dimension_numbers = #tpu.dot_dimension_numbers<[1], [0], [0], [1], [0, 0, 1, 1], [], []>} : vector<8x32xf32>, vector<32x32xf32>, vector<8x32xf32> -> vector<8x32xf32>
    %c0_16 = arith.constant 0 : index
    %c0_17 = arith.constant 0 : index
    %15 = vector.load %arg8[%c0_16, %c0_17] : memref<1x32xf32, #tpu.memory_space<vmem>>, vector<1x32xf32>
    %16 = vector.broadcast %15 : vector<1x32xf32> to vector<8x32xf32>
    %17 = arith.addf %14, %16 : vector<8x32xf32>
    %18 = vector.extract_strided_slice %7 {offsets = [0, 0], sizes = [8, 8], strides = [1, 1]} : vector<8x32xf32> to vector<8x8xf32>
    %19 = vector.extract_strided_slice %12 {offsets = [0, 0], sizes = [8, 8], strides = [1, 1]} : vector<8x32xf32> to vector<8x8xf32>
    %20 = vector.extract_strided_slice %17 {offsets = [0, 0], sizes = [8, 8], strides = [1, 1]} : vector<8x32xf32> to vector<8x8xf32>
    %cst_18 = arith.constant dense<0.000000e+00> : vector<8x8xf32>
    %21 = tpu.matmul %18, %19, %cst_18 {dimension_numbers = #tpu.dot_dimension_numbers<[1], [1], [0], [0], [0, 0, 1, 0], [], []>} : vector<8x8xf32>, vector<8x8xf32>, vector<8x8xf32> -> vector<8x8xf32>
    %cst_19 = arith.constant 0.353553385 : f32
    %22 = vector.broadcast %cst_19 : f32 to vector<8x8xf32>
    %23 = arith.mulf %21, %22 : vector<8x8xf32>
    %24 = arith.addf %23, %2 : vector<8x8xf32>
    %cst_20 = arith.constant dense<0xFF800000> : vector<8xf32>
    %25 = vector.multi_reduction <maximumf>, %24, %cst_20 [1] : vector<8x8xf32> to vector<8xf32>
    %26 = vector.shape_cast %25 : vector<8xf32> to vector<8x1xf32>
    %27 = vector.broadcast %26 : vector<8x1xf32> to vector<8x8xf32>
    %28 = arith.subf %24, %27 : vector<8x8xf32>
    %29 = math.exp %28 : vector<8x8xf32>
    %cst_21 = arith.constant dense<0.000000e+00> : vector<8xf32>
    %30 = vector.multi_reduction <add>, %29, %cst_21 [1] : vector<8x8xf32> to vector<8xf32>
    %31 = vector.shape_cast %30 : vector<8xf32> to vector<8x1xf32>
    %32 = vector.broadcast %31 : vector<8x1xf32> to vector<8x8xf32>
    %33 = arith.divf %29, %32 : vector<8x8xf32>
    %cst_22 = arith.constant dense<0.000000e+00> : vector<8x8xf32>
    %34 = tpu.matmul %33, %20, %cst_22 {dimension_numbers = #tpu.dot_dimension_numbers<[1], [0], [0], [1], [0, 0, 1, 1], [], []>} : vector<8x8xf32>, vector<8x8xf32>, vector<8x8xf32> -> vector<8x8xf32>
    %35 = vector.extract_strided_slice %7 {offsets = [0, 8], sizes = [8, 8], strides = [1, 1]} : vector<8x32xf32> to vector<8x8xf32>
    %36 = vector.extract_strided_slice %12 {offsets = [0, 8], sizes = [8, 8], strides = [1, 1]} : vector<8x32xf32> to vector<8x8xf32>
    %37 = vector.extract_strided_slice %17 {offsets = [0, 8], sizes = [8, 8], strides = [1, 1]} : vector<8x32xf32> to vector<8x8xf32>
    %cst_23 = arith.constant dense<0.000000e+00> : vector<8x8xf32>
    %38 = tpu.matmul %35, %36, %cst_23 {dimension_numbers = #tpu.dot_dimension_numbers<[1], [1], [0], [0], [0, 0, 1, 0], [], []>} : vector<8x8xf32>, vector<8x8xf32>, vector<8x8xf32> -> vector<8x8xf32>
    %cst_24 = arith.constant 0.353553385 : f32
    %39 = vector.broadcast %cst_24 : f32 to vector<8x8xf32>
    %40 = arith.mulf %38, %39 : vector<8x8xf32>
    %41 = arith.addf %40, %2 : vector<8x8xf32>
    %cst_25 = arith.constant dense<0xFF800000> : vector<8xf32>
    %42 = vector.multi_reduction <maximumf>, %41, %cst_25 [1] : vector<8x8xf32> to vector<8xf32>
    %43 = vector.shape_cast %42 : vector<8xf32> to vector<8x1xf32>
    %44 = vector.broadcast %43 : vector<8x1xf32> to vector<8x8xf32>
    %45 = arith.subf %41, %44 : vector<8x8xf32>
    %46 = math.exp %45 : vector<8x8xf32>
    %cst_26 = arith.constant dense<0.000000e+00> : vector<8xf32>
    %47 = vector.multi_reduction <add>, %46, %cst_26 [1] : vector<8x8xf32> to vector<8xf32>
    %48 = vector.shape_cast %47 : vector<8xf32> to vector<8x1xf32>
    %49 = vector.broadcast %48 : vector<8x1xf32> to vector<8x8xf32>
    %50 = arith.divf %46, %49 : vector<8x8xf32>
    %cst_27 = arith.constant dense<0.000000e+00> : vector<8x8xf32>
    %51 = tpu.matmul %50, %37, %cst_27 {dimension_numbers = #tpu.dot_dimension_numbers<[1], [0], [0], [1], [0, 0, 1, 1], [], []>} : vector<8x8xf32>, vector<8x8xf32>, vector<8x8xf32> -> vector<8x8xf32>
    %52 = vector.extract_strided_slice %7 {offsets = [0, 16], sizes = [8, 8], strides = [1, 1]} : vector<8x32xf32> to vector<8x8xf32>
    %53 = vector.extract_strided_slice %12 {offsets = [0, 16], sizes = [8, 8], strides = [1, 1]} : vector<8x32xf32> to vector<8x8xf32>
    %54 = vector.extract_strided_slice %17 {offsets = [0, 16], sizes = [8, 8], strides = [1, 1]} : vector<8x32xf32> to vector<8x8xf32>
    %cst_28 = arith.constant dense<0.000000e+00> : vector<8x8xf32>
    %55 = tpu.matmul %52, %53, %cst_28 {dimension_numbers = #tpu.dot_dimension_numbers<[1], [1], [0], [0], [0, 0, 1, 0], [], []>} : vector<8x8xf32>, vector<8x8xf32>, vector<8x8xf32> -> vector<8x8xf32>
    %cst_29 = arith.constant 0.353553385 : f32
    %56 = vector.broadcast %cst_29 : f32 to vector<8x8xf32>
    %57 = arith.mulf %55, %56 : vector<8x8xf32>
    %58 = arith.addf %57, %2 : vector<8x8xf32>
    %cst_30 = arith.constant dense<0xFF800000> : vector<8xf32>
    %59 = vector.multi_reduction <maximumf>, %58, %cst_30 [1] : vector<8x8xf32> to vector<8xf32>
    %60 = vector.shape_cast %59 : vector<8xf32> to vector<8x1xf32>
    %61 = vector.broadcast %60 : vector<8x1xf32> to vector<8x8xf32>
    %62 = arith.subf %58, %61 : vector<8x8xf32>
    %63 = math.exp %62 : vector<8x8xf32>
    %cst_31 = arith.constant dense<0.000000e+00> : vector<8xf32>
    %64 = vector.multi_reduction <add>, %63, %cst_31 [1] : vector<8x8xf32> to vector<8xf32>
    %65 = vector.shape_cast %64 : vector<8xf32> to vector<8x1xf32>
    %66 = vector.broadcast %65 : vector<8x1xf32> to vector<8x8xf32>
    %67 = arith.divf %63, %66 : vector<8x8xf32>
    %cst_32 = arith.constant dense<0.000000e+00> : vector<8x8xf32>
    %68 = tpu.matmul %67, %54, %cst_32 {dimension_numbers = #tpu.dot_dimension_numbers<[1], [0], [0], [1], [0, 0, 1, 1], [], []>} : vector<8x8xf32>, vector<8x8xf32>, vector<8x8xf32> -> vector<8x8xf32>
    %69 = vector.extract_strided_slice %7 {offsets = [0, 24], sizes = [8, 8], strides = [1, 1]} : vector<8x32xf32> to vector<8x8xf32>
    %70 = vector.extract_strided_slice %12 {offsets = [0, 24], sizes = [8, 8], strides = [1, 1]} : vector<8x32xf32> to vector<8x8xf32>
    %71 = vector.extract_strided_slice %17 {offsets = [0, 24], sizes = [8, 8], strides = [1, 1]} : vector<8x32xf32> to vector<8x8xf32>
    %cst_33 = arith.constant dense<0.000000e+00> : vector<8x8xf32>
    %72 = tpu.matmul %69, %70, %cst_33 {dimension_numbers = #tpu.dot_dimension_numbers<[1], [1], [0], [0], [0, 0, 1, 0], [], []>} : vector<8x8xf32>, vector<8x8xf32>, vector<8x8xf32> -> vector<8x8xf32>
    %cst_34 = arith.constant 0.353553385 : f32
    %73 = vector.broadcast %cst_34 : f32 to vector<8x8xf32>
    %74 = arith.mulf %72, %73 : vector<8x8xf32>
    %75 = arith.addf %74, %2 : vector<8x8xf32>
    %cst_35 = arith.constant dense<0xFF800000> : vector<8xf32>
    %76 = vector.multi_reduction <maximumf>, %75, %cst_35 [1] : vector<8x8xf32> to vector<8xf32>
    %77 = vector.shape_cast %76 : vector<8xf32> to vector<8x1xf32>
    %78 = vector.broadcast %77 : vector<8x1xf32> to vector<8x8xf32>
    %79 = arith.subf %75, %78 : vector<8x8xf32>
    %80 = math.exp %79 : vector<8x8xf32>
    %cst_36 = arith.constant dense<0.000000e+00> : vector<8xf32>
    %81 = vector.multi_reduction <add>, %80, %cst_36 [1] : vector<8x8xf32> to vector<8xf32>
    %82 = vector.shape_cast %81 : vector<8xf32> to vector<8x1xf32>
    %83 = vector.broadcast %82 : vector<8x1xf32> to vector<8x8xf32>
    %84 = arith.divf %80, %83 : vector<8x8xf32>
    %cst_37 = arith.constant dense<0.000000e+00> : vector<8x8xf32>
    %85 = tpu.matmul %84, %71, %cst_37 {dimension_numbers = #tpu.dot_dimension_numbers<[1], [0], [0], [1], [0, 0, 1, 1], [], []>} : vector<8x8xf32>, vector<8x8xf32>, vector<8x8xf32> -> vector<8x8xf32>
    %86 = tpu.concatenate %34, %51, %68, %85 in 1 : vector<8x8xf32>, vector<8x8xf32>, vector<8x8xf32>, vector<8x8xf32> -> vector<8x32xf32>
    %c0_38 = arith.constant 0 : index
    %c0_39 = arith.constant 0 : index
    %87 = vector.load %arg9[%c0_38, %c0_39] : memref<32x32xf32, #tpu.memory_space<vmem>>, vector<32x32xf32>
    %cst_40 = arith.constant dense<0.000000e+00> : vector<8x32xf32>
    %88 = tpu.matmul %86, %87, %cst_40 {dimension_numbers = #tpu.dot_dimension_numbers<[1], [0], [0], [1], [0, 0, 1, 1], [], []>} : vector<8x32xf32>, vector<32x32xf32>, vector<8x32xf32> -> vector<8x32xf32>
    %c0_41 = arith.constant 0 : index
    %c0_42 = arith.constant 0 : index
    %89 = vector.load %arg10[%c0_41, %c0_42] : memref<1x32xf32, #tpu.memory_space<vmem>>, vector<1x32xf32>
    %90 = vector.broadcast %89 : vector<1x32xf32> to vector<8x32xf32>
    %91 = arith.addf %88, %90 : vector<8x32xf32>
    %92 = arith.addf %1, %91 : vector<8x32xf32>
    %c0_43 = arith.constant 0 : index
    %c0_44 = arith.constant 0 : index
    %93 = vector.load %arg11[%c0_43, %c0_44] : memref<1x32xf32, #tpu.memory_space<vmem>>, vector<1x32xf32>
    %c0_45 = arith.constant 0 : index
    %c0_46 = arith.constant 0 : index
    %94 = vector.load %arg12[%c0_45, %c0_46] : memref<1x32xf32, #tpu.memory_space<vmem>>, vector<1x32xf32>
    %cst_47 = arith.constant dense<0.000000e+00> : vector<8xf32>
    %95 = vector.multi_reduction <add>, %92, %cst_47 [1] : vector<8x32xf32> to vector<8xf32>
    %96 = vector.shape_cast %95 : vector<8xf32> to vector<8x1xf32>
    %cst_48 = arith.constant 3.200000e+01 : f32
    %97 = vector.broadcast %cst_48 : f32 to vector<8x1xf32>
    %98 = arith.divf %96, %97 : vector<8x1xf32>
    %99 = vector.broadcast %98 : vector<8x1xf32> to vector<8x32xf32>
    %100 = arith.subf %92, %99 : vector<8x32xf32>
    %101 = arith.mulf %100, %100 : vector<8x32xf32>
    %cst_49 = arith.constant dense<0.000000e+00> : vector<8xf32>
    %102 = vector.multi_reduction <add>, %101, %cst_49 [1] : vector<8x32xf32> to vector<8xf32>
    %103 = vector.shape_cast %102 : vector<8xf32> to vector<8x1xf32>
    %cst_50 = arith.constant 3.200000e+01 : f32
    %104 = vector.broadcast %cst_50 : f32 to vector<8x1xf32>
    %105 = arith.divf %103, %104 : vector<8x1xf32>
    %106 = vector.broadcast %98 : vector<8x1xf32> to vector<8x32xf32>
    %107 = arith.subf %92, %106 : vector<8x32xf32>
    %cst_51 = arith.constant 9.99999974E-6 : f32
    %108 = vector.broadcast %cst_51 : f32 to vector<8x1xf32>
    %109 = arith.addf %105, %108 : vector<8x1xf32>
    %110 = math.rsqrt %109 : vector<8x1xf32>
    %111 = vector.broadcast %110 : vector<8x1xf32> to vector<8x32xf32>
    %112 = arith.mulf %107, %111 : vector<8x32xf32>
    %113 = vector.broadcast %93 : vector<1x32xf32> to vector<8x32xf32>
    %114 = arith.mulf %112, %113 : vector<8x32xf32>
    %115 = vector.broadcast %94 : vector<1x32xf32> to vector<8x32xf32>
    %116 = arith.addf %114, %115 : vector<8x32xf32>
    %c0_52 = arith.constant 0 : index
    %c0_53 = arith.constant 0 : index
    %117 = vector.load %arg13[%c0_52, %c0_53] : memref<32x64xf32, #tpu.memory_space<vmem>>, vector<32x64xf32>
    %cst_54 = arith.constant dense<0.000000e+00> : vector<8x64xf32>
    %118 = tpu.matmul %116, %117, %cst_54 {dimension_numbers = #tpu.dot_dimension_numbers<[1], [0], [0], [1], [0, 0, 1, 1], [], []>} : vector<8x32xf32>, vector<32x64xf32>, vector<8x64xf32> -> vector<8x64xf32>
    %c0_55 = arith.constant 0 : index
    %c0_56 = arith.constant 0 : index
    %119 = vector.load %arg14[%c0_55, %c0_56] : memref<1x64xf32, #tpu.memory_space<vmem>>, vector<1x64xf32>
    %120 = vector.broadcast %119 : vector<1x64xf32> to vector<8x64xf32>
    %121 = arith.addf %118, %120 : vector<8x64xf32>
    %cst_57 = arith.constant 0.000000e+00 : f32
    %122 = vector.broadcast %cst_57 : f32 to vector<8x64xf32>
    %123 = arith.maximumf %121, %122 : vector<8x64xf32>
    %c0_58 = arith.constant 0 : index
    %c0_59 = arith.constant 0 : index
    %124 = vector.load %arg15[%c0_58, %c0_59] : memref<64x32xf32, #tpu.memory_space<vmem>>, vector<64x32xf32>
    %cst_60 = arith.constant dense<0.000000e+00> : vector<8x32xf32>
    %125 = tpu.matmul %123, %124, %cst_60 {dimension_numbers = #tpu.dot_dimension_numbers<[1], [0], [0], [1], [0, 0, 1, 1], [], []>} : vector<8x64xf32>, vector<64x32xf32>, vector<8x32xf32> -> vector<8x32xf32>
    %c0_61 = arith.constant 0 : index
    %c0_62 = arith.constant 0 : index
    %126 = vector.load %arg16[%c0_61, %c0_62] : memref<1x32xf32, #tpu.memory_space<vmem>>, vector<1x32xf32>
    %127 = vector.broadcast %126 : vector<1x32xf32> to vector<8x32xf32>
    %128 = arith.addf %125, %127 : vector<8x32xf32>
    %129 = arith.addf %116, %128 : vector<8x32xf32>
    %c0_63 = arith.constant 0 : index
    %c0_64 = arith.constant 0 : index
    %130 = vector.load %arg17[%c0_63, %c0_64] : memref<1x32xf32, #tpu.memory_space<vmem>>, vector<1x32xf32>
    %c0_65 = arith.constant 0 : index
    %c0_66 = arith.constant 0 : index
    %131 = vector.load %arg18[%c0_65, %c0_66] : memref<1x32xf32, #tpu.memory_space<vmem>>, vector<1x32xf32>
    %cst_67 = arith.constant dense<0.000000e+00> : vector<8xf32>
    %132 = vector.multi_reduction <add>, %129, %cst_67 [1] : vector<8x32xf32> to vector<8xf32>
    %133 = vector.shape_cast %132 : vector<8xf32> to vector<8x1xf32>
    %cst_68 = arith.constant 3.200000e+01 : f32
    %134 = vector.broadcast %cst_68 : f32 to vector<8x1xf32>
    %135 = arith.divf %133, %134 : vector<8x1xf32>
    %136 = vector.broadcast %135 : vector<8x1xf32> to vector<8x32xf32>
    %137 = arith.subf %129, %136 : vector<8x32xf32>
    %138 = arith.mulf %137, %137 : vector<8x32xf32>
    %cst_69 = arith.constant dense<0.000000e+00> : vector<8xf32>
    %139 = vector.multi_reduction <add>, %138, %cst_69 [1] : vector<8x32xf32> to vector<8xf32>
    %140 = vector.shape_cast %139 : vector<8xf32> to vector<8x1xf32>
    %cst_70 = arith.constant 3.200000e+01 : f32
    %141 = vector.broadcast %cst_70 : f32 to vector<8x1xf32>
    %142 = arith.divf %140, %141 : vector<8x1xf32>
    %143 = vector.broadcast %135 : vector<8x1xf32> to vector<8x32xf32>
    %144 = arith.subf %129, %143 : vector<8x32xf32>
    %cst_71 = arith.constant 9.99999974E-6 : f32
    %145 = vector.broadcast %cst_71 : f32 to vector<8x1xf32>
    %146 = arith.addf %142, %145 : vector<8x1xf32>
    %147 = math.rsqrt %146 : vector<8x1xf32>
    %148 = vector.broadcast %147 : vector<8x1xf32> to vector<8x32xf32>
    %149 = arith.mulf %144, %148 : vector<8x32xf32>
    %150 = vector.broadcast %130 : vector<1x32xf32> to vector<8x32xf32>
    %151 = arith.mulf %149, %150 : vector<8x32xf32>
    %152 = vector.broadcast %131 : vector<1x32xf32> to vector<8x32xf32>
    %153 = arith.addf %151, %152 : vector<8x32xf32>
    %154 = vector.shape_cast %153 : vector<8x32xf32> to vector<1x8x32xf32>
    %c0_72 = arith.constant 0 : index
    %c0_73 = arith.constant 0 : index
    %c0_74 = arith.constant 0 : index
    %155 = vector.load %arg19[%c0_72, %c0_73, %c0_74] : memref<1x8x32xf32, #tpu.memory_space<vmem>>, vector<1x8x32xf32>
    tpu.vector_store %arg19[%c0_72, %c0_73, %c0_74], %154 {strides = array<i32>} : memref<1x8x32xf32, #tpu.memory_space<vmem>>, vector<1x8x32xf32>,
    return
  }
  func.func @transform_0(%arg0: i32) -> (i32, i32, i32) {
    %c0_i32 = arith.constant 0 : i32
    %c0_i32_0 = arith.constant 0 : i32
    %c0_i32_1 = arith.constant 0 : i32
    return %arg0, %c0_i32, %c0_i32_0 : i32, i32, i32
  }
  func.func @transform_1(%arg0: i32) -> (i32, i32) {
    %c0_i32 = arith.constant 0 : i32
    %c0_i32_0 = arith.constant 0 : i32
    %c0_i32_1 = arith.constant 0 : i32
    return %c0_i32, %c0_i32_0 : i32, i32
  }
  func.func @transform_2(%arg0: i32) -> (i32, i32) {
    %c0_i32 = arith.constant 0 : i32
    %c0_i32_0 = arith.constant 0 : i32
    %c0_i32_1 = arith.constant 0 : i32
    return %c0_i32, %c0_i32_0 : i32, i32
  }
  func.func @transform_3(%arg0: i32) -> (i32, i32) {
    %c0_i32 = arith.constant 0 : i32
    %c0_i32_0 = arith.constant 0 : i32
    %c0_i32_1 = arith.constant 0 : i32
    return %c0_i32, %c0_i32_0 : i32, i32
  }
  func.func @transform_4(%arg0: i32) -> (i32, i32) {
    %c0_i32 = arith.constant 0 : i32
    %c0_i32_0 = arith.constant 0 : i32
    %c0_i32_1 = arith.constant 0 : i32
    return %c0_i32, %c0_i32_0 : i32, i32
  }
  func.func @transform_5(%arg0: i32) -> (i32, i32) {
    %c0_i32 = arith.constant 0 : i32
    %c0_i32_0 = arith.constant 0 : i32
    %c0_i32_1 = arith.constant 0 : i32
    return %c0_i32, %c0_i32_0 : i32, i32
  }
  func.func @transform_6(%arg0: i32) -> (i32, i32) {
    %c0_i32 = arith.constant 0 : i32
    %c0_i32_0 = arith.constant 0 : i32
    %c0_i32_1 = arith.constant 0 : i32
    return %c0_i32, %c0_i32_0 : i32, i32
  }
  func.func @transform_7(%arg0: i32) -> (i32, i32) {
    %c0_i32 = arith.constant 0 : i32
    %c0_i32_0 = arith.constant 0 : i32
    %c0_i32_1 = arith.constant 0 : i32
    return %c0_i32, %c0_i32_0 : i32, i32
  }
  func.func @transform_8(%arg0: i32) -> (i32, i32) {
    %c0_i32 = arith.constant 0 : i32
    %c0_i32_0 = arith.constant 0 : i32
    %c0_i32_1 = arith.constant 0 : i32
    return %c0_i32, %c0_i32_0 : i32, i32
  }
  func.func @transform_9(%arg0: i32) -> (i32, i32) {
    %c0_i32 = arith.constant 0 : i32
    %c0_i32_0 = arith.constant 0 : i32
    %c0_i32_1 = arith.constant 0 : i32
    return %c0_i32, %c0_i32_0 : i32, i32
  }
  func.func @transform_10(%arg0: i32) -> (i32, i32) {
    %c0_i32 = arith.constant 0 : i32
    %c0_i32_0 = arith.constant 0 : i32
    %c0_i32_1 = arith.constant 0 : i32
    return %c0_i32, %c0_i32_0 : i32, i32
  }
  func.func @transform_11(%arg0: i32) -> (i32, i32) {
    %c0_i32 = arith.constant 0 : i32
    %c0_i32_0 = arith.constant 0 : i32
    %c0_i32_1 = arith.constant 0 : i32
    return %c0_i32, %c0_i32_0 : i32, i32
  }
  func.func @transform_12(%arg0: i32) -> (i32, i32) {
    %c0_i32 = arith.constant 0 : i32
    %c0_i32_0 = arith.constant 0 : i32
    %c0_i32_1 = arith.constant 0 : i32
    return %c0_i32, %c0_i32_0 : i32, i32
  }
  func.func @transform_13(%arg0: i32) -> (i32, i32) {
    %c0_i32 = arith.constant 0 : i32
    %c0_i32_0 = arith.constant 0 : i32
    %c0_i32_1 = arith.constant 0 : i32
    return %c0_i32, %c0_i32_0 : i32, i32
  }
  func.func @transform_14(%arg0: i32) -> (i32, i32) {
    %c0_i32 = arith.constant 0 : i32
    %c0_i32_0 = arith.constant 0 : i32
    %c0_i32_1 = arith.constant 0 : i32
    return %c0_i32, %c0_i32_0 : i32, i32
  }
  func.func @transform_15(%arg0: i32) -> (i32, i32) {
    %c0_i32 = arith.constant 0 : i32
    %c0_i32_0 = arith.constant 0 : i32
    %c0_i32_1 = arith.constant 0 : i32
    return %c0_i32, %c0_i32_0 : i32, i32
  }
  func.func @transform_16(%arg0: i32) -> (i32, i32) {
    %c0_i32 = arith.constant 0 : i32
    %c0_i32_0 = arith.constant 0 : i32
    %c0_i32_1 = arith.constant 0 : i32
    return %c0_i32, %c0_i32_0 : i32, i32
  }
  func.func @transform_17(%arg0: i32) -> (i32, i32) {
    %c0_i32 = arith.constant 0 : i32
    %c0_i32_0 = arith.constant 0 : i32
    %c0_i32_1 = arith.constant 0 : i32
    return %c0_i32, %c0_i32_0 : i32, i32
  }
  func.func @transform_18(%arg0: i32) -> (i32, i32, i32) {
    %c0_i32 = arith.constant 0 : i32
    %c0_i32_0 = arith.constant 0 : i32
    %c0_i32_1 = arith.constant 0 : i32
    return %arg0, %c0_i32, %c0_i32_0 : i32, i32, i32
  }
}

</mosaic_0001>

<llo_original>
// kernel: tpu_custom_call.1
$region0: #{tpu_custom_call.1}
  #allocation0 [shape = 'u32[]', space=smem, size = 0x4, offset = 0x4, fixed_abs, tag = 'smem constant byte address 0x4 - core index']
  #allocation1 [shape = 'u32[72,128]{1,0:T(1,128)}', space=vmem, size = 0x9000, scoped, tag = 'internal scratch']
  %s0 = inlined_call_operand.hbm [shape: f32[2,8,32], index: 0, kind: input, shape index: {}]
  %s1 = inlined_call_operand.hbm [shape: f32[8,8], index: 1, kind: input, shape index: {}]
  %s2 = inlined_call_operand.vmem [shape: f32[32,32], index: 2, kind: input, shape index: {}]
  %s3 = inlined_call_operand.vmem [shape: f32[1,32], index: 3, kind: input, shape index: {}]
  %s4 = inlined_call_operand.vmem [shape: f32[32,32], index: 4, kind: input, shape index: {}]
  %s5 = inlined_call_operand.vmem [shape: f32[1,32], index: 5, kind: input, shape index: {}]
  %s6 = inlined_call_operand.vmem [shape: f32[32,32], index: 6, kind: input, shape index: {}]
  %s7 = inlined_call_operand.vmem [shape: f32[1,32], index: 7, kind: input, shape index: {}]
  %s8 = inlined_call_operand.hbm [shape: f32[32,32], index: 8, kind: input, shape index: {}]
  %s9 = inlined_call_operand.vmem [shape: f32[1,32], index: 9, kind: input, shape index: {}]
  %s10 = inlined_call_operand.vmem [shape: f32[1,32], index: 10, kind: input, shape index: {}]
  %s11 = inlined_call_operand.vmem [shape: f32[1,32], index: 11, kind: input, shape index: {}]
  %s12 = inlined_call_operand.hbm [shape: f32[32,64], index: 12, kind: input, shape index: {}]
  %s13 = inlined_call_operand.vmem [shape: f32[1,64], index: 13, kind: input, shape index: {}]
  %s14 = inlined_call_operand.vmem [shape: f32[64,32], index: 14, kind: input, shape index: {}]
  %s15 = inlined_call_operand.vmem [shape: f32[1,32], index: 15, kind: input, shape index: {}]
  %s16 = inlined_call_operand.vmem [shape: f32[1,32], index: 16, kind: input, shape index: {}]
  %s17 = inlined_call_operand.vmem [shape: f32[1,32], index: 17, kind: input, shape index: {}]
  %s18 = inlined_call_operand.hbm [shape: f32[2,8,32], index: 18, kind: output, shape index: {}]
  %s19 = sld [smem:[#allocation0]]
  $region121: #{tpu_custom_call.1} parent=0
    _
  %s21 = ssub.s32 1, %s19
  %s22 = scalar_select 0, %s21, %s19
  $region1: #{tpu_custom_call.1} parent=0
    #allocation2 [shape = 'u8[8192]{0}', space=vmem, size = 0x2000, scoped, tag = 'input window, operand 0']
    #allocation3 [shape = 's32[2]{0}', space=sflag, size = 0x8, scoped, tag = 'scoped memory for tpu_custom_call.1']
    #allocation4 [shape = 's32[2]{0}', space=sflag, size = 0x8, scoped, tag = 'scoped memory for tpu_custom_call.1']
    #allocation5 [shape = 'u8[4096]{0}', space=vmem, size = 0x1000, scoped, tag = 'input window, operand 1, single buffered']
    #allocation6 [shape = 's32[1]{0}', space=sflag, size = 0x4, scoped, tag = 'scoped memory for tpu_custom_call.1']
    #allocation7 [shape = 'u8[16384]{0}', space=vmem, size = 0x4000, scoped, tag = 'input window, operand 8, single buffered']
    #allocation8 [shape = 'u8[16384]{0}', space=vmem, size = 0x4000, scoped, tag = 'input window, operand 12, single buffered']
    #allocation9 [shape = 's32[1]{0}', space=sflag, size = 0x4, scoped, tag = 'scoped memory for tpu_custom_call.1']
    #allocation10 [shape = 'u8[8192]{0}', space=vmem, size = 0x2000, scoped, tag = 'output window, operand 0']
    %23 = vsyncpa [#allocation3], 0
    %s24 = scalar_lea.sflag [#allocation3], 1
    %25 = vsyncpa %s24, 0
    %26 = vsyncpa [#allocation6], 0
    %27 = vsyncpa [#allocation9], 0
    %28 = vsyncpa [#allocation4], 0
    %s29 = scalar_lea.sflag [#allocation4], 1
    %30 = vsyncpa %s29, 0
    loop: start=0, step=1, limit=4
    $region2: #{tpu_custom_call.1} parent=1 // loop_pre_header
      _
    $region3: #{tpu_custom_call.1} parent=1 // loop_header
      %s32 = sphi 0, %s36
      %p33 = scmp.ge.s32.totalorder %s32, 4
      %s42 = sphi 0, %s44
      %s45 = sphi 0, %s42
      %s46 = sphi 0, %s45
      %s62 = sphi 0, %s46
      %s66 = sphi 0, %s66
      %s68 = sphi 0, %s66
      %s69 = sphi 0, %s68
      %s83 = sphi 0, %s69
      %s87 = sphi 0, %s87
      %s89 = sphi 0, %s87
      %s90 = sphi 0, %s89
      %s104 = sphi 0, %s90
      %s108 = sphi 0, %s108
      %s110 = sphi 0, %s108
      %s111 = sphi 0, %s110
      %s125 = sphi 0, %s111
      %s129 = sphi 0, %s129
      %s131 = sphi 0, %s129
      %s132 = sphi 0, %s131
      %s146 = sphi 0, %s132
      %s150 = sphi 0, %s150
      %s152 = sphi 0, %s150
      %s153 = sphi 0, %s152
      %s167 = sphi 0, %s153
      %s171 = sphi 0, %s171
      %s173 = sphi 0, %s171
      %s174 = sphi 0, %s173
      %s188 = sphi 0, %s174
      %s192 = sphi 0, %s192
      %s194 = sphi 0, %s192
      %s195 = sphi 0, %s194
      %s209 = sphi 0, %s195
      %s213 = sphi 0, %s213
      %s215 = sphi 0, %s213
      %s216 = sphi 0, %s215
      %s230 = sphi 0, %s216
      %s234 = sphi 0, %s234
      %s236 = sphi 0, %s234
      %s237 = sphi 0, %s236
      %s251 = sphi 0, %s237
      %s255 = sphi 0, %s255
      %s257 = sphi 0, %s255
      %s258 = sphi 0, %s257
      %s272 = sphi 0, %s258
      %s276 = sphi 0, %s276
      %s278 = sphi 0, %s276
      %s279 = sphi 0, %s278
      %s293 = sphi 0, %s279
      %s297 = sphi 0, %s297
      %s299 = sphi 0, %s297
      %s300 = sphi 0, %s299
      %s314 = sphi 0, %s300
      %s318 = sphi 0, %s318
      %s320 = sphi 0, %s318
      %s321 = sphi 0, %s320
      %s335 = sphi 0, %s321
      %s339 = sphi 0, %s339
      %s341 = sphi 0, %s339
      %s342 = sphi 0, %s341
      %s356 = sphi 0, %s342
      %s360 = sphi 0, %s360
      %s362 = sphi 0, %s360
      %s363 = sphi 0, %s362
      %s377 = sphi 0, %s363
      %s381 = sphi 0, %s381
      %s383 = sphi 0, %s381
      %s384 = sphi 0, %s383
      %s398 = sphi 0, %s384
      %s402 = sphi 0, %s402
      %s404 = sphi 0, %s402
      %s405 = sphi 0, %s404
      %s419 = sphi 0, %s405
      %s425 = sphi 0, %s427
      %s428 = sphi 0, %s425
      %s429 = sphi 0, %s428
      %s445 = sphi 0, %s429
    $region4: #{tpu_custom_call.1} parent=1 // loop_header_branch
      %35 = sbr.rel (%p33) target = $region8
    $region5: #{tpu_custom_call.1} parent=1 // loop_body
      %s37 = ssub.s32 %s32, 1
      %s38 = ssub.s32 %s32, 2
      %s39 = sadd.s32 %s32, 1
      %s40 = ssub.s32 %s32, %s39
      %p41 = scmp.eq.s32.totalorder %s40, 0
      %s43 = sadd.s32 %s42, 1
      %s44 = scalar_select %p41, %s42, %s43
      %p47 = pneg %p41
      %p48 = scmp.eq.s32.totalorder %s32, 1
      %p49 = por %p47, %p48
      %p50 = scmp.ne.s32.totalorder %s42, %s45
      %p51 = scmp.eq.s32.totalorder %s32, 0
      %p52 = por %p50, %p51
      %p53 = scmp.ne.s32.totalorder %s42, %s45
      %p54 = scmp.eq.s32.totalorder %s37, 1
      %p55 = por %p53, %p54
      %p56 = scmp.ne.s32.totalorder %s45, %s46
      %p57 = scmp.eq.s32.totalorder %s37, 0
      %p58 = por %p56, %p57
      %p59 = scmp.ne.s32.totalorder %s45, %s46
      %p60 = scmp.eq.s32.totalorder %s38, 1
      %p61 = por %p59, %p60
      %p63 = scmp.ne.s32.totalorder %s46, %s62
      %p64 = scmp.eq.s32.totalorder %s38, 0
      %p65 = por %p63, %p64
      %s67 = sadd.s32 %s66, 1
      %p70 = scmp.eq.s32.totalorder %s32, 1
      %p71 = scmp.ne.s32.totalorder %s66, %s68
      %p72 = scmp.eq.s32.totalorder %s32, 0
      %p73 = por %p71, %p72
      %p74 = scmp.ne.s32.totalorder %s66, %s68
      %p75 = scmp.eq.s32.totalorder %s37, 1
      %p76 = por %p74, %p75
      %p77 = scmp.ne.s32.totalorder %s68, %s69
      %p78 = scmp.eq.s32.totalorder %s37, 0
      %p79 = por %p77, %p78
      %p80 = scmp.ne.s32.totalorder %s68, %s69
      %p81 = scmp.eq.s32.totalorder %s38, 1
      %p82 = por %p80, %p81
      %p84 = scmp.ne.s32.totalorder %s69, %s83
      %p85 = scmp.eq.s32.totalorder %s38, 0
      %p86 = por %p84, %p85
      %s88 = sadd.s32 %s87, 1
      %p91 = scmp.eq.s32.totalorder %s32, 1
      %p92 = scmp.ne.s32.totalorder %s87, %s89
      %p93 = scmp.eq.s32.totalorder %s32, 0
      %p94 = por %p92, %p93
      %p95 = scmp.ne.s32.totalorder %s87, %s89
      %p96 = scmp.eq.s32.totalorder %s37, 1
      %p97 = por %p95, %p96
      %p98 = scmp.ne.s32.totalorder %s89, %s90
      %p99 = scmp.eq.s32.totalorder %s37, 0
      %p100 = por %p98, %p99
      %p101 = scmp.ne.s32.totalorder %s89, %s90
      %p102 = scmp.eq.s32.totalorder %s38, 1
      %p103 = por %p101, %p102
      %p105 = scmp.ne.s32.totalorder %s90, %s104
      %p106 = scmp.eq.s32.totalorder %s38, 0
      %p107 = por %p105, %p106
      %s109 = sadd.s32 %s108, 1
      %p112 = scmp.eq.s32.totalorder %s32, 1
      %p113 = scmp.ne.s32.totalorder %s108, %s110
      %p114 = scmp.eq.s32.totalorder %s32, 0
      %p115 = por %p113, %p114
      %p116 = scmp.ne.s32.totalorder %s108, %s110
      %p117 = scmp.eq.s32.totalorder %s37, 1
      %p118 = por %p116, %p117
      %p119 = scmp.ne.s32.totalorder %s110, %s111
      %p120 = scmp.eq.s32.totalorder %s37, 0
      %p121 = por %p119, %p120
      %p122 = scmp.ne.s32.totalorder %s110, %s111
      %p123 = scmp.eq.s32.totalorder %s38, 1
      %p124 = por %p122, %p123
      %p126 = scmp.ne.s32.totalorder %s111, %s125
      %p127 = scmp.eq.s32.totalorder %s38, 0
      %p128 = por %p126, %p127
      %s130 = sadd.s32 %s129, 1
      %p133 = scmp.eq.s32.totalorder %s32, 1
      %p134 = scmp.ne.s32.totalorder %s129, %s131
      %p135 = scmp.eq.s32.totalorder %s32, 0
      %p136 = por %p134, %p135
      %p137 = scmp.ne.s32.totalorder %s129, %s131
      %p138 = scmp.eq.s32.totalorder %s37, 1
      %p139 = por %p137, %p138
      %p140 = scmp.ne.s32.totalorder %s131, %s132
      %p141 = scmp.eq.s32.totalorder %s37, 0
      %p142 = por %p140, %p141
      %p143 = scmp.ne.s32.totalorder %s131, %s132
      %p144 = scmp.eq.s32.totalorder %s38, 1
      %p145 = por %p143, %p144
      %p147 = scmp.ne.s32.totalorder %s132, %s146
      %p148 = scmp.eq.s32.totalorder %s38, 0
      %p149 = por %p147, %p148
      %s151 = sadd.s32 %s150, 1
      %p154 = scmp.eq.s32.totalorder %s32, 1
      %p155 = scmp.ne.s32.totalorder %s150, %s152
      %p156 = scmp.eq.s32.totalorder %s32, 0
      %p157 = por %p155, %p156
      %p158 = scmp.ne.s32.totalorder %s150, %s152
      %p159 = scmp.eq.s32.totalorder %s37, 1
      %p160 = por %p158, %p159
      %p161 = scmp.ne.s32.totalorder %s152, %s153
      %p162 = scmp.eq.s32.totalorder %s37, 0
      %p163 = por %p161, %p162
      %p164 = scmp.ne.s32.totalorder %s152, %s153
      %p165 = scmp.eq.s32.totalorder %s38, 1
      %p166 = por %p164, %p165
      %p168 = scmp.ne.s32.totalorder %s153, %s167
      %p169 = scmp.eq.s32.totalorder %s38, 0
      %p170 = por %p168, %p169
      %s172 = sadd.s32 %s171, 1
      %p175 = scmp.eq.s32.totalorder %s32, 1
      %p176 = scmp.ne.s32.totalorder %s171, %s173
      %p177 = scmp.eq.s32.totalorder %s32, 0
      %p178 = por %p176, %p177
      %p179 = scmp.ne.s32.totalorder %s171, %s173
      %p180 = scmp.eq.s32.totalorder %s37, 1
      %p181 = por %p179, %p180
      %p182 = scmp.ne.s32.totalorder %s173, %s174
      %p183 = scmp.eq.s32.totalorder %s37, 0
      %p184 = por %p182, %p183
      %p185 = scmp.ne.s32.totalorder %s173, %s174
      %p186 = scmp.eq.s32.totalorder %s38, 1
      %p187 = por %p185, %p186
      %p189 = scmp.ne.s32.totalorder %s174, %s188
      %p190 = scmp.eq.s32.totalorder %s38, 0
      %p191 = por %p189, %p190
      %s193 = sadd.s32 %s192, 1
      %p196 = scmp.eq.s32.totalorder %s32, 1
      %p197 = scmp.ne.s32.totalorder %s192, %s194
      %p198 = scmp.eq.s32.totalorder %s32, 0
      %p199 = por %p197, %p198
      %p200 = scmp.ne.s32.totalorder %s192, %s194
      %p201 = scmp.eq.s32.totalorder %s37, 1
      %p202 = por %p200, %p201
      %p203 = scmp.ne.s32.totalorder %s194, %s195
      %p204 = scmp.eq.s32.totalorder %s37, 0
      %p205 = por %p203, %p204
      %p206 = scmp.ne.s32.totalorder %s194, %s195
      %p207 = scmp.eq.s32.totalorder %s38, 1
      %p208 = por %p206, %p207
      %p210 = scmp.ne.s32.totalorder %s195, %s209
      %p211 = scmp.eq.s32.totalorder %s38, 0
      %p212 = por %p210, %p211
      %s214 = sadd.s32 %s213, 1
      %p217 = scmp.eq.s32.totalorder %s32, 1
      %p218 = scmp.ne.s32.totalorder %s213, %s215
      %p219 = scmp.eq.s32.totalorder %s32, 0
      %p220 = por %p218, %p219
      %p221 = scmp.ne.s32.totalorder %s213, %s215
      %p222 = scmp.eq.s32.totalorder %s37, 1
      %p223 = por %p221, %p222
      %p224 = scmp.ne.s32.totalorder %s215, %s216
      %p225 = scmp.eq.s32.totalorder %s37, 0
      %p226 = por %p224, %p225
      %p227 = scmp.ne.s32.totalorder %s215, %s216
      %p228 = scmp.eq.s32.totalorder %s38, 1
      %p229 = por %p227, %p228
      %p231 = scmp.ne.s32.totalorder %s216, %s230
      %p232 = scmp.eq.s32.totalorder %s38, 0
      %p233 = por %p231, %p232
      %s235 = sadd.s32 %s234, 1
      %p238 = scmp.eq.s32.totalorder %s32, 1
      %p239 = scmp.ne.s32.totalorder %s234, %s236
      %p240 = scmp.eq.s32.totalorder %s32, 0
      %p241 = por %p239, %p240
      %p242 = scmp.ne.s32.totalorder %s234, %s236
      %p243 = scmp.eq.s32.totalorder %s37, 1
      %p244 = por %p242, %p243
      %p245 = scmp.ne.s32.totalorder %s236, %s237
      %p246 = scmp.eq.s32.totalorder %s37, 0
      %p247 = por %p245, %p246
      %p248 = scmp.ne.s32.totalorder %s236, %s237
      %p249 = scmp.eq.s32.totalorder %s38, 1
      %p250 = por %p248, %p249
      %p252 = scmp.ne.s32.totalorder %s237, %s251
      %p253 = scmp.eq.s32.totalorder %s38, 0
      %p254 = por %p252, %p253
      %s256 = sadd.s32 %s255, 1
      %p259 = scmp.eq.s32.totalorder %s32, 1
      %p260 = scmp.ne.s32.totalorder %s255, %s257
      %p261 = scmp.eq.s32.totalorder %s32, 0
      %p262 = por %p260, %p261
      %p263 = scmp.ne.s32.totalorder %s255, %s257
      %p264 = scmp.eq.s32.totalorder %s37, 1
      %p265 = por %p263, %p264
      %p266 = scmp.ne.s32.totalorder %s257, %s258
      %p267 = scmp.eq.s32.totalorder %s37, 0
      %p268 = por %p266, %p267
      %p269 = scmp.ne.s32.totalorder %s257, %s258
      %p270 = scmp.eq.s32.totalorder %s38, 1
      %p271 = por %p269, %p270
      %p273 = scmp.ne.s32.totalorder %s258, %s272
      %p274 = scmp.eq.s32.totalorder %s38, 0
      %p275 = por %p273, %p274
      %s277 = sadd.s32 %s276, 1
      %p280 = scmp.eq.s32.totalorder %s32, 1
      %p281 = scmp.ne.s32.totalorder %s276, %s278
      %p282 = scmp.eq.s32.totalorder %s32, 0
      %p283 = por %p281, %p282
      %p284 = scmp.ne.s32.totalorder %s276, %s278
      %p285 = scmp.eq.s32.totalorder %s37, 1
      %p286 = por %p284, %p285
      %p287 = scmp.ne.s32.totalorder %s278, %s279
      %p288 = scmp.eq.s32.totalorder %s37, 0
      %p289 = por %p287, %p288
      %p290 = scmp.ne.s32.totalorder %s278, %s279
      %p291 = scmp.eq.s32.totalorder %s38, 1
      %p292 = por %p290, %p291
      %p294 = scmp.ne.s32.totalorder %s279, %s293
      %p295 = scmp.eq.s32.totalorder %s38, 0
      %p296 = por %p294, %p295
      %s298 = sadd.s32 %s297, 1
      %p301 = scmp.eq.s32.totalorder %s32, 1
      %p302 = scmp.ne.s32.totalorder %s297, %s299
      %p303 = scmp.eq.s32.totalorder %s32, 0
      %p304 = por %p302, %p303
      %p305 = scmp.ne.s32.totalorder %s297, %s299
      %p306 = scmp.eq.s32.totalorder %s37, 1
      %p307 = por %p305, %p306
      %p308 = scmp.ne.s32.totalorder %s299, %s300
      %p309 = scmp.eq.s32.totalorder %s37, 0
      %p310 = por %p308, %p309
      %p311 = scmp.ne.s32.totalorder %s299, %s300
      %p312 = scmp.eq.s32.totalorder %s38, 1
      %p313 = por %p311, %p312
      %p315 = scmp.ne.s32.totalorder %s300, %s314
      %p316 = scmp.eq.s32.totalorder %s38, 0
      %p317 = por %p315, %p316
      %s319 = sadd.s32 %s318, 1
      %p322 = scmp.eq.s32.totalorder %s32, 1
      %p323 = scmp.ne.s32.totalorder %s318, %s320
      %p324 = scmp.eq.s32.totalorder %s32, 0
      %p325 = por %p323, %p324
      %p326 = scmp.ne.s32.totalorder %s318, %s320
      %p327 = scmp.eq.s32.totalorder %s37, 1
      %p328 = por %p326, %p327
      %p329 = scmp.ne.s32.totalorder %s320, %s321
      %p330 = scmp.eq.s32.totalorder %s37, 0
      %p331 = por %p329, %p330
      %p332 = scmp.ne.s32.totalorder %s320, %s321
      %p333 = scmp.eq.s32.totalorder %s38, 1
      %p334 = por %p332, %p333
      %p336 = scmp.ne.s32.totalorder %s321, %s335
      %p337 = scmp.eq.s32.totalorder %s38, 0
      %p338 = por %p336, %p337
      %s340 = sadd.s32 %s339, 1
      %p343 = scmp.eq.s32.totalorder %s32, 1
      %p344 = scmp.ne.s32.totalorder %s339, %s341
      %p345 = scmp.eq.s32.totalorder %s32, 0
      %p346 = por %p344, %p345
      %p347 = scmp.ne.s32.totalorder %s339, %s341
      %p348 = scmp.eq.s32.totalorder %s37, 1
      %p349 = por %p347, %p348
      %p350 = scmp.ne.s32.totalorder %s341, %s342
      %p351 = scmp.eq.s32.totalorder %s37, 0
      %p352 = por %p350, %p351
      %p353 = scmp.ne.s32.totalorder %s341, %s342
      %p354 = scmp.eq.s32.totalorder %s38, 1
      %p355 = por %p353, %p354
      %p357 = scmp.ne.s32.totalorder %s342, %s356
      %p358 = scmp.eq.s32.totalorder %s38, 0
      %p359 = por %p357, %p358
      %s361 = sadd.s32 %s360, 1
      %p364 = scmp.eq.s32.totalorder %s32, 1
      %p365 = scmp.ne.s32.totalorder %s360, %s362
      %p366 = scmp.eq.s32.totalorder %s32, 0
      %p367 = por %p365, %p366
      %p368 = scmp.ne.s32.totalorder %s360, %s362
      %p369 = scmp.eq.s32.totalorder %s37, 1
      %p370 = por %p368, %p369
      %p371 = scmp.ne.s32.totalorder %s362, %s363
      %p372 = scmp.eq.s32.totalorder %s37, 0
      %p373 = por %p371, %p372
      %p374 = scmp.ne.s32.totalorder %s362, %s363
      %p375 = scmp.eq.s32.totalorder %s38, 1
      %p376 = por %p374, %p375
      %p378 = scmp.ne.s32.totalorder %s363, %s377
      %p379 = scmp.eq.s32.totalorder %s38, 0
      %p380 = por %p378, %p379
      %s382 = sadd.s32 %s381, 1
      %p385 = scmp.eq.s32.totalorder %s32, 1
      %p386 = scmp.ne.s32.totalorder %s381, %s383
      %p387 = scmp.eq.s32.totalorder %s32, 0
      %p388 = por %p386, %p387
      %p389 = scmp.ne.s32.totalorder %s381, %s383
      %p390 = scmp.eq.s32.totalorder %s37, 1
      %p391 = por %p389, %p390
      %p392 = scmp.ne.s32.totalorder %s383, %s384
      %p393 = scmp.eq.s32.totalorder %s37, 0
      %p394 = por %p392, %p393
      %p395 = scmp.ne.s32.totalorder %s383, %s384
      %p396 = scmp.eq.s32.totalorder %s38, 1
      %p397 = por %p395, %p396
      %p399 = scmp.ne.s32.totalorder %s384, %s398
      %p400 = scmp.eq.s32.totalorder %s38, 0
      %p401 = por %p399, %p400
      %s403 = sadd.s32 %s402, 1
      %p406 = scmp.eq.s32.totalorder %s32, 1
      %p407 = scmp.ne.s32.totalorder %s402, %s404
      %p408 = scmp.eq.s32.totalorder %s32, 0
      %p409 = por %p407, %p408
      %p410 = scmp.ne.s32.totalorder %s402, %s404
      %p411 = scmp.eq.s32.totalorder %s37, 1
      %p412 = por %p410, %p411
      %p413 = scmp.ne.s32.totalorder %s404, %s405
      %p414 = scmp.eq.s32.totalorder %s37, 0
      %p415 = por %p413, %p414
      %p416 = scmp.ne.s32.totalorder %s404, %s405
      %p417 = scmp.eq.s32.totalorder %s38, 1
      %p418 = por %p416, %p417
      %p420 = scmp.ne.s32.totalorder %s405, %s419
      %p421 = scmp.eq.s32.totalorder %s38, 0
      %p422 = por %p420, %p421
      %s423 = ssub.s32 %s32, %s39
      %p424 = scmp.eq.s32.totalorder %s423, 0
      %s426 = sadd.s32 %s425, 1
      %s427 = scalar_select %p424, %s425, %s426
      %p430 = pneg %p424
      %p431 = scmp.eq.s32.totalorder %s32, 1
      %p432 = por %p430, %p431
      %p433 = scmp.ne.s32.totalorder %s425, %s428
      %p434 = scmp.eq.s32.totalorder %s32, 0
      %p435 = por %p433, %p434
      %p436 = scmp.ne.s32.totalorder %s425, %s428
      %p437 = scmp.eq.s32.totalorder %s37, 1
      %p438 = por %p436, %p437
      %p439 = scmp.ne.s32.totalorder %s428, %s429
      %p440 = scmp.eq.s32.totalorder %s37, 0
      %p441 = por %p439, %p440
      %p442 = scmp.ne.s32.totalorder %s428, %s429
      %p443 = scmp.eq.s32.totalorder %s38, 1
      %p444 = por %p442, %p443
      %p446 = scmp.ne.s32.totalorder %s429, %s445
      %p447 = scmp.eq.s32.totalorder %s38, 0
      %p448 = por %p446, %p447
      %p449 = scmp.le.s32.totalorder 1, %s32
      %p450 = scmp.lt.s32.totalorder %s32, 3
      %p451 = pnand %p449, %p450
      %p452 = pneg %p451
      // Predicated region
      $region9: #{tpu_custom_call.1} parent=5 // pred_check
        _
      $region10: #{tpu_custom_call.1} parent=5 // pred_check_branch
        %454 = sbr.rel (%p451) target = $region12
      $region11: #{tpu_custom_call.1} parent=5 // pred_region
        %s455 = ssub.s32 %s32, 1
        // Predicated region
        $region13: #{tpu_custom_call.1} parent=11 // pred_check
          %p456 = pneg %p79
        $region14: #{tpu_custom_call.1} parent=11 // pred_check_branch
          %458 = sbr.rel (%p456) target = $region16
        $region15: #{tpu_custom_call.1} parent=11 // pred_region
          %460 = vsyncadd [#allocation6], 0
          %s462 = sshll.u32 %s1, 4
          %s463 = int_to_ptr.hbm [resolvable:$true] %s462
          %s464 = sshll.u32 [#allocation5], 4
          %s465 = int_to_ptr.vmem [resolvable:$true] %s464
          %467 = dma.hbm_to_vmem [thread:$0]  %s463, 128, %s465, [#allocation6]
        $region16: #{tpu_custom_call.1} parent=11 // pred_fallthru
          _
        // Predicated region
        $region17: #{tpu_custom_call.1} parent=11 // pred_check
          %p468 = pneg %p100
        $region18: #{tpu_custom_call.1} parent=11 // pred_check_branch
          %470 = sbr.rel (%p468) target = $region20
        $region19: #{tpu_custom_call.1} parent=11 // pred_region
          _
        $region20: #{tpu_custom_call.1} parent=11 // pred_fallthru
          _
        // Predicated region
        $region21: #{tpu_custom_call.1} parent=11 // pred_check
          %p471 = pneg %p121
        $region22: #{tpu_custom_call.1} parent=11 // pred_check_branch
          %473 = sbr.rel (%p471) target = $region24
        $region23: #{tpu_custom_call.1} parent=11 // pred_region
          _
        $region24: #{tpu_custom_call.1} parent=11 // pred_fallthru
          _
        // Predicated region
        $region25: #{tpu_custom_call.1} parent=11 // pred_check
          %p474 = pneg %p142
        $region26: #{tpu_custom_call.1} parent=11 // pred_check_branch
          %476 = sbr.rel (%p474) target = $region28
        $region27: #{tpu_custom_call.1} parent=11 // pred_region
          _
        $region28: #{tpu_custom_call.1} parent=11 // pred_fallthru
          _
        // Predicated region
        $region29: #{tpu_custom_call.1} parent=11 // pred_check
          %p477 = pneg %p163
        $region30: #{tpu_custom_call.1} parent=11 // pred_check_branch
          %479 = sbr.rel (%p477) target = $region32
        $region31: #{tpu_custom_call.1} parent=11 // pred_region
          _
        $region32: #{tpu_custom_call.1} parent=11 // pred_fallthru
          _
        // Predicated region
        $region33: #{tpu_custom_call.1} parent=11 // pred_check
          %p480 = pneg %p184
        $region34: #{tpu_custom_call.1} parent=11 // pred_check_branch
          %482 = sbr.rel (%p480) target = $region36
        $region35: #{tpu_custom_call.1} parent=11 // pred_region
          _
        $region36: #{tpu_custom_call.1} parent=11 // pred_fallthru
          _
        // Predicated region
        $region37: #{tpu_custom_call.1} parent=11 // pred_check
          %p483 = pneg %p205
        $region38: #{tpu_custom_call.1} parent=11 // pred_check_branch
          %485 = sbr.rel (%p483) target = $region40
        $region39: #{tpu_custom_call.1} parent=11 // pred_region
          _
        $region40: #{tpu_custom_call.1} parent=11 // pred_fallthru
          _
        // Predicated region
        $region41: #{tpu_custom_call.1} parent=11 // pred_check
          %p486 = pneg %p226
        $region42: #{tpu_custom_call.1} parent=11 // pred_check_branch
          %488 = sbr.rel (%p486) target = $region44
        $region43: #{tpu_custom_call.1} parent=11 // pred_region
          %490 = vsyncadd [#allocation6], 0
          %s491 = sshll.u32 %s8, 4
          %s492 = int_to_ptr.hbm [resolvable:$true] %s491
          %s493 = sshll.u32 [#allocation7], 4
          %s494 = int_to_ptr.vmem [resolvable:$true] %s493
          %499 = dma.hbm_to_vmem [thread:$0]  %s492, 512, %s494, [#allocation6], 128, 128, 8
        $region44: #{tpu_custom_call.1} parent=11 // pred_fallthru
          _
        // Predicated region
        $region45: #{tpu_custom_call.1} parent=11 // pred_check
          %p500 = pneg %p247
        $region46: #{tpu_custom_call.1} parent=11 // pred_check_branch
          %502 = sbr.rel (%p500) target = $region48
        $region47: #{tpu_custom_call.1} parent=11 // pred_region
          _
        $region48: #{tpu_custom_call.1} parent=11 // pred_fallthru
          _
        // Predicated region
        $region49: #{tpu_custom_call.1} parent=11 // pred_check
          %p503 = pneg %p268
        $region50: #{tpu_custom_call.1} parent=11 // pred_check_branch
          %505 = sbr.rel (%p503) target = $region52
        $region51: #{tpu_custom_call.1} parent=11 // pred_region
          _
        $region52: #{tpu_custom_call.1} parent=11 // pred_fallthru
          _
        // Predicated region
        $region53: #{tpu_custom_call.1} parent=11 // pred_check
          %p506 = pneg %p289
        $region54: #{tpu_custom_call.1} parent=11 // pred_check_branch
          %508 = sbr.rel (%p506) target = $region56
        $region55: #{tpu_custom_call.1} parent=11 // pred_region
          _
        $region56: #{tpu_custom_call.1} parent=11 // pred_fallthru
          _
        // Predicated region
        $region57: #{tpu_custom_call.1} parent=11 // pred_check
          %p509 = pneg %p310
        $region58: #{tpu_custom_call.1} parent=11 // pred_check_branch
          %511 = sbr.rel (%p509) target = $region60
        $region59: #{tpu_custom_call.1} parent=11 // pred_region
          %513 = vsyncadd [#allocation9], 0
          %s514 = sshll.u32 %s12, 4
          %s515 = int_to_ptr.hbm [resolvable:$true] %s514
          %s516 = sshll.u32 [#allocation8], 4
          %s517 = int_to_ptr.vmem [resolvable:$true] %s516
          %522 = dma.hbm_to_vmem [thread:$0]  %s515, 512, %s517, [#allocation9], 128, 128, 8
        $region60: #{tpu_custom_call.1} parent=11 // pred_fallthru
          _
        // Predicated region
        $region61: #{tpu_custom_call.1} parent=11 // pred_check
          %p523 = pneg %p331
        $region62: #{tpu_custom_call.1} parent=11 // pred_check_branch
          %525 = sbr.rel (%p523) target = $region64
        $region63: #{tpu_custom_call.1} parent=11 // pred_region
          _
        $region64: #{tpu_custom_call.1} parent=11 // pred_fallthru
          _
        // Predicated region
        $region65: #{tpu_custom_call.1} parent=11 // pred_check
          %p526 = pneg %p352
        $region66: #{tpu_custom_call.1} parent=11 // pred_check_branch
          %528 = sbr.rel (%p526) target = $region68
        $region67: #{tpu_custom_call.1} parent=11 // pred_region
          _
        $region68: #{tpu_custom_call.1} parent=11 // pred_fallthru
          _
        // Predicated region
        $region69: #{tpu_custom_call.1} parent=11 // pred_check
          %p529 = pneg %p373
        $region70: #{tpu_custom_call.1} parent=11 // pred_check_branch
          %531 = sbr.rel (%p529) target = $region72
        $region71: #{tpu_custom_call.1} parent=11 // pred_region
          _
        $region72: #{tpu_custom_call.1} parent=11 // pred_fallthru
          _
        // Predicated region
        $region73: #{tpu_custom_call.1} parent=11 // pred_check
          %p532 = pneg %p394
        $region74: #{tpu_custom_call.1} parent=11 // pred_check_branch
          %534 = sbr.rel (%p532) target = $region76
        $region75: #{tpu_custom_call.1} parent=11 // pred_region
          _
        $region76: #{tpu_custom_call.1} parent=11 // pred_fallthru
          _
        // Predicated region
        $region77: #{tpu_custom_call.1} parent=11 // pred_check
          %p535 = pneg %p415
        $region78: #{tpu_custom_call.1} parent=11 // pred_check_branch
          %537 = sbr.rel (%p535) target = $region80
        $region79: #{tpu_custom_call.1} parent=11 // pred_region
          _
        $region80: #{tpu_custom_call.1} parent=11 // pred_fallthru
          _
      $region12: #{tpu_custom_call.1} parent=5 // pred_fallthru
        _
      %p538 = scmp.lt.s32.totalorder %s32, 2
      // Predicated region
      $region81: #{tpu_custom_call.1} parent=5 // pred_check
        %p539 = pneg %p538
      $region82: #{tpu_custom_call.1} parent=5 // pred_check_branch
        %541 = sbr.rel (%p539) target = $region84
      $region83: #{tpu_custom_call.1} parent=5 // pred_region
        // Predicated region
        $region85: #{tpu_custom_call.1} parent=83 // pred_check
          %p542 = pneg %p52
        $region86: #{tpu_custom_call.1} parent=83 // pred_check_branch
          %544 = sbr.rel (%p542) target = $region88
        $region87: #{tpu_custom_call.1} parent=83 // pred_region
          %s545 = sand.u32 %s42, 1
          %s546 = scalar_lea.sflag [#allocation3], %s545
          %s547 = sand.u32 %s42, 1
          %s548 = smul.addr %s547, 8
          %s549 = scalar_lea.vmem [#allocation2], %s548
          %551 = vsyncadd %s546, 0
          %s552 = smul.addr %s32, 8
          %s553 = scalar_lea.hbm %s0, %s552
          %s555 = sshll.u32 %s553, 4
          %s556 = int_to_ptr.hbm [resolvable:$true] %s555
          %s557 = sshll.u32 %s549, 4
          %s558 = int_to_ptr.vmem [resolvable:$true] %s557
          %560 = dma.hbm_to_vmem [thread:$0]  %s556, 128, %s558, %s546
        $region88: #{tpu_custom_call.1} parent=83 // pred_fallthru
          _
      $region84: #{tpu_custom_call.1} parent=5 // pred_fallthru
        _
      %p561 = scmp.le.s32.totalorder 1, %s32
      %p562 = scmp.lt.s32.totalorder %s32, 3
      %p563 = pnand %p561, %p562
      %p564 = pneg %p563
      // Predicated region
      $region89: #{tpu_custom_call.1} parent=5 // pred_check
        _
      $region90: #{tpu_custom_call.1} parent=5 // pred_check_branch
        %566 = sbr.rel (%p563) target = $region92
      $region91: #{tpu_custom_call.1} parent=5 // pred_region
        %s567 = ssub.s32 %s32, 1
        %s568 = sand.u32 %s45, 1
        %s569 = scalar_lea.sflag [#allocation3], %s568
        %s570 = sand.u32 %s45, 1
        %s571 = smul.addr %s570, 8
        %s572 = scalar_lea.vmem [#allocation2], %s571
        // Predicated region
        $region93: #{tpu_custom_call.1} parent=91 // pred_check
          %p573 = pneg %p58
        $region94: #{tpu_custom_call.1} parent=91 // pred_check_branch
          %575 = sbr.rel (%p573) target = $region96
        $region95: #{tpu_custom_call.1} parent=91 // pred_region
          %577 = dma.done %s569, 128
        $region96: #{tpu_custom_call.1} parent=91 // pred_fallthru
          _
        // Predicated region
        $region97: #{tpu_custom_call.1} parent=91 // pred_check
          %p578 = pneg %p79
        $region98: #{tpu_custom_call.1} parent=91 // pred_check_branch
          %580 = sbr.rel (%p578) target = $region100
        $region99: #{tpu_custom_call.1} parent=91 // pred_region
          %582 = dma.done [#allocation6], 128
        $region100: #{tpu_custom_call.1} parent=91 // pred_fallthru
          _
        // Predicated region
        $region101: #{tpu_custom_call.1} parent=91 // pred_check
          %p583 = pneg %p226
        $region102: #{tpu_custom_call.1} parent=91 // pred_check_branch
          %585 = sbr.rel (%p583) target = $region104
        $region103: #{tpu_custom_call.1} parent=91 // pred_region
          %587 = dma.done [#allocation6], 512
        $region104: #{tpu_custom_call.1} parent=91 // pred_fallthru
          _
        // Predicated region
        $region105: #{tpu_custom_call.1} parent=91 // pred_check
          %p588 = pneg %p310
        $region106: #{tpu_custom_call.1} parent=91 // pred_check_branch
          %590 = sbr.rel (%p588) target = $region108
        $region107: #{tpu_custom_call.1} parent=91 // pred_region
          %592 = dma.done [#allocation9], 512
        $region108: #{tpu_custom_call.1} parent=91 // pred_fallthru
          _
        %s593 = sand.u32 %s45, 1
        %s594 = scalar_lea.sflag [#allocation3], %s593
        %s595 = sand.u32 %s45, 1
        %s596 = smul.addr %s595, 8
        %s597 = scalar_lea.vmem [#allocation2], %s596
        %p598 = pneg %p58
        %p599 = pneg %p55
        %p600 = pneg %p79
        %p601 = pneg %p76
        %p602 = pneg %p100
        %p603 = pneg %p97
        %p604 = pneg %p121
        %p605 = pneg %p118
        %p606 = pneg %p142
        %p607 = pneg %p139
        %p608 = pneg %p163
        %p609 = pneg %p160
        %p610 = pneg %p184
        %p611 = pneg %p181
        %p612 = pneg %p205
        %p613 = pneg %p202
        %p614 = pneg %p226
        %p615 = pneg %p223
        %p616 = pneg %p247
        %p617 = pneg %p244
        %p618 = pneg %p268
        %p619 = pneg %p265
        %p620 = pneg %p289
        %p621 = pneg %p286
        %p622 = pneg %p310
        %p623 = pneg %p307
        %p624 = pneg %p331
        %p625 = pneg %p328
        %p626 = pneg %p352
        %p627 = pneg %p349
        %p628 = pneg %p373
        %p629 = pneg %p370
        %p630 = pneg %p394
        %p631 = pneg %p391
        %p632 = pneg %p415
        %p633 = pneg %p412
        %p634 = pneg %p441
        %p635 = pneg %p438
        %s636 = sand.u32 %s428, 1
        %s637 = scalar_lea.sflag [#allocation4], %s636
        %s638 = sand.u32 %s428, 1
        %s639 = smul.addr %s638, 8
        %s640 = scalar_lea.vmem [#allocation10], %s639
        %v641 = vld [vmem:[%s572] sm:$0xff]
        %v642 = vld [vmem:[#allocation5] sm:$0xff]
        %v643 = vld [vmem:[%s2] sm:$0xff]
        %v644 = vld [vmem:[%s2 + $0x8] sm:$0xff]
        %v645 = vld [vmem:[%s2 + $0x10] sm:$0xff]
        %v646 = vld [vmem:[%s2 + $0x18] sm:$0xff]
        %v647 = vld [vmem:[%s3] sm:$0x1]
        %v649 = vperm.slane %v647, 0
        %vm651 = vcmask 261120
        %v653 = vsel %vm651, %v641, 0
        %655 = vmatpush.msra.mxu0 0.0
        %656 = vmatpush.msra.mxu0 0.0
        %657 = vmatpush.msra.mxu0 0.0
        %658 = vmatpush.msra.mxu0 0.0
        %659 = vmatpush.msra.mxu0 0.0
        %660 = vmatpush.msra.mxu0 0.0
        %661 = vmatpush.msra.mxu0 0.0
        %662 = vmatpush.msra.mxu0 0.0
        %663 = vmatpush.msra.mxu0 0.0
        %664 = vmatpush.msra.mxu0 0.0
        %665 = vmatpush.msra.mxu0 0.0
        %666 = vmatpush.msra.mxu0 0.0
        %667 = vmatpush.msra.mxu0 %v646
        %668 = vmatpush.msra.mxu0 %v645
        %669 = vmatpush.msra.mxu0 %v644
        %670 = vmatpush.msra.mxu0 %v643
        %671 = vmatmul.f32.gmra.mxu0 %v653
        %v672 = vpop.f32.mrf.mxu0
        %v673 = vadd.f32 %v649, %v672
        %674 = vdwg.mxu0
        %v675 = vld [vmem:[%s4] sm:$0xff]
        %v676 = vld [vmem:[%s4 + $0x8] sm:$0xff]
        %v677 = vld [vmem:[%s4 + $0x10] sm:$0xff]
        %v678 = vld [vmem:[%s4 + $0x18] sm:$0xff]
        %v679 = vld [vmem:[%s5] sm:$0x1]
        %v681 = vperm.slane %v679, 0
        %683 = vmatpush.msra.mxu0 0.0
        %684 = vmatpush.msra.mxu0 0.0
        %685 = vmatpush.msra.mxu0 0.0
        %686 = vmatpush.msra.mxu0 0.0
        %687 = vmatpush.msra.mxu0 0.0
        %688 = vmatpush.msra.mxu0 0.0
        %689 = vmatpush.msra.mxu0 0.0
        %690 = vmatpush.msra.mxu0 0.0
        %691 = vmatpush.msra.mxu0 0.0
        %692 = vmatpush.msra.mxu0 0.0
        %693 = vmatpush.msra.mxu0 0.0
        %694 = vmatpush.msra.mxu0 0.0
        %695 = vmatpush.msra.mxu0 %v678
        %696 = vmatpush.msra.mxu0 %v677
        %697 = vmatpush.msra.mxu0 %v676
        %698 = vmatpush.msra.mxu0 %v675
        %699 = vmatmul.f32.gmra.mxu0 %v653
        %v700 = vpop.f32.mrf.mxu0
        %v701 = vadd.f32 %v681, %v700
        %702 = vdwg.mxu0
        %v703 = vld [vmem:[%s6] sm:$0xff]
        %v704 = vld [vmem:[%s6 + $0x8] sm:$0xff]
        %v705 = vld [vmem:[%s6 + $0x10] sm:$0xff]
        %v706 = vld [vmem:[%s6 + $0x18] sm:$0xff]
        %v707 = vld [vmem:[%s7] sm:$0x1]
        %v709 = vperm.slane %v707, 0
        %711 = vmatpush.msra.mxu0 0.0
        %712 = vmatpush.msra.mxu0 0.0
        %713 = vmatpush.msra.mxu0 0.0
        %714 = vmatpush.msra.mxu0 0.0
        %715 = vmatpush.msra.mxu0 0.0
        %716 = vmatpush.msra.mxu0 0.0
        %717 = vmatpush.msra.mxu0 0.0
        %718 = vmatpush.msra.mxu0 0.0
        %719 = vmatpush.msra.mxu0 0.0
        %720 = vmatpush.msra.mxu0 0.0
        %721 = vmatpush.msra.mxu0 0.0
        %722 = vmatpush.msra.mxu0 0.0
        %723 = vmatpush.msra.mxu0 %v706
        %724 = vmatpush.msra.mxu0 %v705
        %725 = vmatpush.msra.mxu0 %v704
        %726 = vmatpush.msra.mxu0 %v703
        %727 = vmatmul.f32.gmra.mxu0 %v653
        %v728 = vpop.f32.mrf.mxu0
        %v729 = vadd.f32 %v709, %v728
        %730 = vdwg.mxu0
        %vm731 = vcmask 64512
        %v733 = vsel %vm731, %v673, 0
        %v736 = vsel %vm731, %v701, 0
        %738 = vmatpush.xpose.msra.mxu0 0.0
        %739 = vmatpush.xpose.msra.mxu0 0.0
        %740 = vmatpush.xpose.msra.mxu0 0.0
        %741 = vmatpush.xpose.msra.mxu0 0.0
        %742 = vmatpush.xpose.msra.mxu0 0.0
        %743 = vmatpush.xpose.msra.mxu0 0.0
        %744 = vmatpush.xpose.msra.mxu0 0.0
        %745 = vmatpush.xpose.msra.mxu0 0.0
        %746 = vmatpush.xpose.msra.mxu0 0.0
        %747 = vmatpush.xpose.msra.mxu0 0.0
        %748 = vmatpush.xpose.msra.mxu0 0.0
        %749 = vmatpush.xpose.msra.mxu0 0.0
        %750 = vmatpush.xpose.msra.mxu0 0.0
        %751 = vmatpush.xpose.msra.mxu0 0.0
        %752 = vmatpush.xpose.msra.mxu0 0.0
        %753 = vmatpush.xpose.msra.mxu0 %v736
        %754 = vmatmul.f32.gmra.mxu0 %v733
        %v755 = vpop.f32.mrf.mxu0
        %v756 = vadd.f32 0.0, %v755
        %757 = vdwg.mxu0
        %v758 = vmul.f32 %v756, 0.35355338
        %v759 = vadd.f32 %v758, %v642
        %v760 = vsel %vm731, %v759, -inf
        %761 = vmax.xlane.f32.xlu0 %v760
        %v762 = vpop.xlane.xlu0 %761
        %v763 = vsub.f32 %v759, %v762
        %v764 = vmul.f32 %v763, 1.442695
        %v765 = vpow.pop %v764
        %v766 = vsel %vm731, %v765, 0.0
        %767 = vadd.xlane.f32.xlu0 %v766
        %v768 = vpop.xlane.xlu0 %767
        %v769 = vrcp.pop %v768
        %v770 = vmul.f32 %v768, %v769
        %v771 = vsub.f32 1.0, %v770
        %v772 = vmul.f32 %v769, %v771
        %v773 = vadd.f32 %v769, %v772
        %vm774 = vweird.f32 %v768
        %vm775 = vweird.f32 %v769
        %vm776 = vmor %vm774, %vm775
        %v777 = vsel %vm776, %v769, %v773
        %v778 = vand.u32 2147483647, %v768
        %vm779 = vcmp.eq.f32.partialorder %v778, 8.507059e+37
        %v780 = vand.u32 %v768, 2147483648
        %v781 = vor.u32 1.1754944e-38, %v780
        %v782 = vsel %vm779, %v781, %v777
        %v783 = vmul.f32 %v765, %v782
        %v785 = vsel %vm731, %v783, 0
        %787 = vmatpush.msra.mxu0 0.0
        %788 = vmatpush.msra.mxu0 0.0
        %789 = vmatpush.msra.mxu0 0.0
        %790 = vmatpush.msra.mxu0 0.0
        %791 = vmatpush.msra.mxu0 0.0
        %792 = vmatpush.msra.mxu0 0.0
        %793 = vmatpush.msra.mxu0 0.0
        %794 = vmatpush.msra.mxu0 0.0
        %795 = vmatpush.msra.mxu0 0.0
        %796 = vmatpush.msra.mxu0 0.0
        %797 = vmatpush.msra.mxu0 0.0
        %798 = vmatpush.msra.mxu0 0.0
        %799 = vmatpush.msra.mxu0 0.0
        %800 = vmatpush.msra.mxu0 0.0
        %801 = vmatpush.msra.mxu0 0.0
        %802 = vmatpush.msra.mxu0 %v729
        %803 = vmatmul.f32.gmra.mxu0 %v785
        %v804 = vpop.f32.mrf.mxu0
        %v805 = vadd.f32 0.0, %v804
        %806 = vdwg.mxu0
        %807 = vrot.lane.b32.xlu0 %v673, 120
        %v808 = vpop.permute.xlu0 %807
        %809 = vrot.lane.b32.xlu0 %v701, 120
        %v810 = vpop.permute.xlu0 %809
        %v811 = vsel %vm731, %v808, 0
        %v813 = vsel %vm731, %v810, 0
        %815 = vmatpush.xpose.msra.mxu0 0.0
        %816 = vmatpush.xpose.msra.mxu0 0.0
        %817 = vmatpush.xpose.msra.mxu0 0.0
        %818 = vmatpush.xpose.msra.mxu0 0.0
        %819 = vmatpush.xpose.msra.mxu0 0.0
        %820 = vmatpush.xpose.msra.mxu0 0.0
        %821 = vmatpush.xpose.msra.mxu0 0.0
        %822 = vmatpush.xpose.msra.mxu0 0.0
        %823 = vmatpush.xpose.msra.mxu0 0.0
        %824 = vmatpush.xpose.msra.mxu0 0.0
        %825 = vmatpush.xpose.msra.mxu0 0.0
        %826 = vmatpush.xpose.msra.mxu0 0.0
        %827 = vmatpush.xpose.msra.mxu0 0.0
        %828 = vmatpush.xpose.msra.mxu0 0.0
        %829 = vmatpush.xpose.msra.mxu0 0.0
        %830 = vmatpush.xpose.msra.mxu0 %v813
        %831 = vmatmul.f32.gmra.mxu0 %v811
        %v832 = vpop.f32.mrf.mxu0
        %v833 = vadd.f32 0.0, %v832
        %834 = vdwg.mxu0
        %v835 = vmul.f32 %v833, 0.35355338
        %v836 = vadd.f32 %v835, %v642
        %v837 = vsel %vm731, %v836, -inf
        %838 = vmax.xlane.f32.xlu0 %v837
        %v839 = vpop.xlane.xlu0 %838
        %v840 = vsub.f32 %v836, %v839
        %v841 = vmul.f32 %v840, 1.442695
        %v842 = vpow.pop %v841
        %v843 = vsel %vm731, %v842, 0.0
        %844 = vadd.xlane.f32.xlu0 %v843
        %v845 = vpop.xlane.xlu0 %844
        %v846 = vrcp.pop %v845
        %v847 = vmul.f32 %v845, %v846
        %v848 = vsub.f32 1.0, %v847
        %v849 = vmul.f32 %v846, %v848
        %v850 = vadd.f32 %v846, %v849
        %vm851 = vweird.f32 %v845
        %vm852 = vweird.f32 %v846
        %vm853 = vmor %vm851, %vm852
        %v854 = vsel %vm853, %v846, %v850
        %v855 = vand.u32 2147483647, %v845
        %vm856 = vcmp.eq.f32.partialorder %v855, 8.507059e+37
        %v857 = vand.u32 %v845, 2147483648
        %v858 = vor.u32 1.1754944e-38, %v857
        %v859 = vsel %vm856, %v858, %v854
        %v860 = vmul.f32 %v842, %v859
        %862 = vrot.lane.b32.xlu0 %v729, 120
        %v863 = vpop.permute.xlu0 %862
        %v866 = vsel %vm731, %v860, 0
        %868 = vmatpush.msra.mxu0 0.0
        %869 = vmatpush.msra.mxu0 0.0
        %870 = vmatpush.msra.mxu0 0.0
        %871 = vmatpush.msra.mxu0 0.0
        %872 = vmatpush.msra.mxu0 0.0
        %873 = vmatpush.msra.mxu0 0.0
        %874 = vmatpush.msra.mxu0 0.0
        %875 = vmatpush.msra.mxu0 0.0
        %876 = vmatpush.msra.mxu0 0.0
        %877 = vmatpush.msra.mxu0 0.0
        %878 = vmatpush.msra.mxu0 0.0
        %879 = vmatpush.msra.mxu0 0.0
        %880 = vmatpush.msra.mxu0 0.0
        %881 = vmatpush.msra.mxu0 0.0
        %882 = vmatpush.msra.mxu0 0.0
        %883 = vmatpush.msra.mxu0 %v863
        %884 = vmatmul.f32.gmra.mxu0 %v866
        %v885 = vpop.f32.mrf.mxu0
        %v886 = vadd.f32 0.0, %v885
        %887 = vdwg.mxu0
        %888 = vrot.lane.b32.xlu0 %v673, 112
        %v889 = vpop.permute.xlu0 %888
        %890 = vrot.lane.b32.xlu0 %v701, 112
        %v891 = vpop.permute.xlu0 %890
        %v892 = vsel %vm731, %v889, 0
        %v894 = vsel %vm731, %v891, 0
        %896 = vmatpush.xpose.msra.mxu0 0.0
        %897 = vmatpush.xpose.msra.mxu0 0.0
        %898 = vmatpush.xpose.msra.mxu0 0.0
        %899 = vmatpush.xpose.msra.mxu0 0.0
        %900 = vmatpush.xpose.msra.mxu0 0.0
        %901 = vmatpush.xpose.msra.mxu0 0.0
        %902 = vmatpush.xpose.msra.mxu0 0.0
        %903 = vmatpush.xpose.msra.mxu0 0.0
        %904 = vmatpush.xpose.msra.mxu0 0.0
        %905 = vmatpush.xpose.msra.mxu0 0.0
        %906 = vmatpush.xpose.msra.mxu0 0.0
        %907 = vmatpush.xpose.msra.mxu0 0.0
        %908 = vmatpush.xpose.msra.mxu0 0.0
        %909 = vmatpush.xpose.msra.mxu0 0.0
        %910 = vmatpush.xpose.msra.mxu0 0.0
        %911 = vmatpush.xpose.msra.mxu0 %v894
        %912 = vmatmul.f32.gmra.mxu0 %v892
        %v913 = vpop.f32.mrf.mxu0
        %v914 = vadd.f32 0.0, %v913
        %915 = vdwg.mxu0
        %v916 = vmul.f32 %v914, 0.35355338
        %v917 = vadd.f32 %v916, %v642
        %v918 = vsel %vm731, %v917, -inf
        %919 = vmax.xlane.f32.xlu0 %v918
        %v920 = vpop.xlane.xlu0 %919
        %v921 = vsub.f32 %v917, %v920
        %v922 = vmul.f32 %v921, 1.442695
        %v923 = vpow.pop %v922
        %v924 = vsel %vm731, %v923, 0.0
        %925 = vadd.xlane.f32.xlu0 %v924
        %v926 = vpop.xlane.xlu0 %925
        %v927 = vrcp.pop %v926
        %v928 = vmul.f32 %v926, %v927
        %v929 = vsub.f32 1.0, %v928
        %v930 = vmul.f32 %v927, %v929
        %v931 = vadd.f32 %v927, %v930
        %vm932 = vweird.f32 %v926
        %vm933 = vweird.f32 %v927
        %vm934 = vmor %vm932, %vm933
        %v935 = vsel %vm934, %v927, %v931
        %v936 = vand.u32 2147483647, %v926
        %vm937 = vcmp.eq.f32.partialorder %v936, 8.507059e+37
        %v938 = vand.u32 %v926, 2147483648
        %v939 = vor.u32 1.1754944e-38, %v938
        %v940 = vsel %vm937, %v939, %v935
        %v941 = vmul.f32 %v923, %v940
        %942 = vrot.lane.b32.xlu0 %v729, 112
        %v943 = vpop.permute.xlu0 %942
        %v946 = vsel %vm731, %v941, 0
        %948 = vmatpush.msra.mxu0 0.0
        %949 = vmatpush.msra.mxu0 0.0
        %950 = vmatpush.msra.mxu0 0.0
        %951 = vmatpush.msra.mxu0 0.0
        %952 = vmatpush.msra.mxu0 0.0
        %953 = vmatpush.msra.mxu0 0.0
        %954 = vmatpush.msra.mxu0 0.0
        %955 = vmatpush.msra.mxu0 0.0
        %956 = vmatpush.msra.mxu0 0.0
        %957 = vmatpush.msra.mxu0 0.0
        %958 = vmatpush.msra.mxu0 0.0
        %959 = vmatpush.msra.mxu0 0.0
        %960 = vmatpush.msra.mxu0 0.0
        %961 = vmatpush.msra.mxu0 0.0
        %962 = vmatpush.msra.mxu0 0.0
        %963 = vmatpush.msra.mxu0 %v943
        %964 = vmatmul.f32.gmra.mxu0 %v946
        %v965 = vpop.f32.mrf.mxu0
        %v966 = vadd.f32 0.0, %v965
        %967 = vdwg.mxu0
        %968 = vrot.lane.b32.xlu0 %v673, 104
        %v969 = vpop.permute.xlu0 %968
        %970 = vrot.lane.b32.xlu0 %v701, 104
        %v971 = vpop.permute.xlu0 %970
        %v972 = vsel %vm731, %v969, 0
        %v974 = vsel %vm731, %v971, 0
        %976 = vmatpush.xpose.msra.mxu0 0.0
        %977 = vmatpush.xpose.msra.mxu0 0.0
        %978 = vmatpush.xpose.msra.mxu0 0.0
        %979 = vmatpush.xpose.msra.mxu0 0.0
        %980 = vmatpush.xpose.msra.mxu0 0.0
        %981 = vmatpush.xpose.msra.mxu0 0.0
        %982 = vmatpush.xpose.msra.mxu0 0.0
        %983 = vmatpush.xpose.msra.mxu0 0.0
        %984 = vmatpush.xpose.msra.mxu0 0.0
        %985 = vmatpush.xpose.msra.mxu0 0.0
        %986 = vmatpush.xpose.msra.mxu0 0.0
        %987 = vmatpush.xpose.msra.mxu0 0.0
        %988 = vmatpush.xpose.msra.mxu0 0.0
        %989 = vmatpush.xpose.msra.mxu0 0.0
        %990 = vmatpush.xpose.msra.mxu0 0.0
        %991 = vmatpush.xpose.msra.mxu0 %v974
        %992 = vmatmul.f32.gmra.mxu0 %v972
        %v993 = vpop.f32.mrf.mxu0
        %v994 = vadd.f32 0.0, %v993
        %995 = vdwg.mxu0
        %v996 = vmul.f32 %v994, 0.35355338
        %v997 = vadd.f32 %v996, %v642
        %v998 = vsel %vm731, %v997, -inf
        %999 = vmax.xlane.f32.xlu0 %v998
        %v1000 = vpop.xlane.xlu0 %999
        %v1001 = vsub.f32 %v997, %v1000
        %v1002 = vmul.f32 %v1001, 1.442695
        %v1003 = vpow.pop %v1002
        %v1004 = vsel %vm731, %v1003, 0.0
        %1005 = vadd.xlane.f32.xlu0 %v1004
        %v1006 = vpop.xlane.xlu0 %1005
        %v1007 = vrcp.pop %v1006
        %v1008 = vmul.f32 %v1006, %v1007
        %v1009 = vsub.f32 1.0, %v1008
        %v1010 = vmul.f32 %v1007, %v1009
        %v1011 = vadd.f32 %v1007, %v1010
        %vm1012 = vweird.f32 %v1006
        %vm1013 = vweird.f32 %v1007
        %vm1014 = vmor %vm1012, %vm1013
        %v1015 = vsel %vm1014, %v1007, %v1011
        %v1016 = vand.u32 2147483647, %v1006
        %vm1017 = vcmp.eq.f32.partialorder %v1016, 8.507059e+37
        %v1018 = vand.u32 %v1006, 2147483648
        %v1019 = vor.u32 1.1754944e-38, %v1018
        %v1020 = vsel %vm1017, %v1019, %v1015
        %v1021 = vmul.f32 %v1003, %v1020
        %1022 = vrot.lane.b32.xlu0 %v729, 104
        %v1023 = vpop.permute.xlu0 %1022
        %v1026 = vsel %vm731, %v1021, 0
        %1028 = vmatpush.msra.mxu0 0.0
        %1029 = vmatpush.msra.mxu0 0.0
        %1030 = vmatpush.msra.mxu0 0.0
        %1031 = vmatpush.msra.mxu0 0.0
        %1032 = vmatpush.msra.mxu0 0.0
        %1033 = vmatpush.msra.mxu0 0.0
        %1034 = vmatpush.msra.mxu0 0.0
        %1035 = vmatpush.msra.mxu0 0.0
        %1036 = vmatpush.msra.mxu0 0.0
        %1037 = vmatpush.msra.mxu0 0.0
        %1038 = vmatpush.msra.mxu0 0.0
        %1039 = vmatpush.msra.mxu0 0.0
        %1040 = vmatpush.msra.mxu0 0.0
        %1041 = vmatpush.msra.mxu0 0.0
        %1042 = vmatpush.msra.mxu0 0.0
        %1043 = vmatpush.msra.mxu0 %v1023
        %1044 = vmatmul.f32.gmra.mxu0 %v1026
        %v1045 = vpop.f32.mrf.mxu0
        %v1046 = vadd.f32 0.0, %v1045
        %1047 = vdwg.mxu0
        %1049 = vrot.lane.b32.xlu0 %v886, 8
        %v1050 = vpop.permute.xlu0 %1049
        %1053 = vrot.lane.b32.xlu0 %v966, 16
        %v1054 = vpop.permute.xlu0 %1053
        %1057 = vrot.lane.b32.xlu0 %v1046, 24
        %v1058 = vpop.permute.xlu0 %1057
        %v1060 = vsel %vm731, %v805, %v1050
        %vm1061 = vcmask 130048
        %v1062 = vsel %vm1061, %v1060, %v1054
        %vm1063 = vcmask 195584
        %v1064 = vsel %vm1063, %v1062, %v1058
        %v1065 = vld [vmem:[#allocation7] sm:$0xff]
        %v1066 = vld [vmem:[#allocation7 + $0x8] sm:$0xff]
        %v1067 = vld [vmem:[#allocation7 + $0x10] sm:$0xff]
        %v1068 = vld [vmem:[#allocation7 + $0x18] sm:$0xff]
        %v1069 = vld [vmem:[%s9] sm:$0x1]
        %v1071 = vperm.slane %v1069, 0
        %v1074 = vsel %vm651, %v1064, 0
        %1076 = vmatpush.msra.mxu0 0.0
        %1077 = vmatpush.msra.mxu0 0.0
        %1078 = vmatpush.msra.mxu0 0.0
        %1079 = vmatpush.msra.mxu0 0.0
        %1080 = vmatpush.msra.mxu0 0.0
        %1081 = vmatpush.msra.mxu0 0.0
        %1082 = vmatpush.msra.mxu0 0.0
        %1083 = vmatpush.msra.mxu0 0.0
        %1084 = vmatpush.msra.mxu0 0.0
        %1085 = vmatpush.msra.mxu0 0.0
        %1086 = vmatpush.msra.mxu0 0.0
        %1087 = vmatpush.msra.mxu0 0.0
        %1088 = vmatpush.msra.mxu0 %v1068
        %1089 = vmatpush.msra.mxu0 %v1067
        %1090 = vmatpush.msra.mxu0 %v1066
        %1091 = vmatpush.msra.mxu0 %v1065
        %1092 = vmatmul.f32.gmra.mxu0 %v1074
        %v1093 = vpop.f32.mrf.mxu0
        %v1094 = vadd.f32 %v1071, %v1093
        %1095 = vdwg.mxu0
        %v1096 = vadd.f32 %v641, %v1094
        %v1097 = vld [vmem:[%s10] sm:$0x1]
        %v1098 = vld [vmem:[%s11] sm:$0x1]
        %v1099 = vsel %vm651, %v1096, 0.0
        %1100 = vadd.xlane.f32.xlu0 %v1099
        %v1101 = vpop.xlane.xlu0 %1100
        %v1102 = vrcp.pop 32.0
        %v1103 = vmul.f32 32.0, %v1102
        %v1104 = vsub.f32 1.0, %v1103
        %v1105 = vmul.f32 %v1102, %v1104
        %v1106 = vadd.f32 %v1102, %v1105
        %vm1107 = vweird.f32 %v1102
        %v1108 = vsel %vm1107, %v1102, %v1106
        %v1109 = vmul.f32 %v1101, %v1108
        %v1110 = vsub.f32 %v1096, %v1109
        %v1111 = vmul.f32 %v1110, %v1110
        %v1112 = vsel %vm651, %v1111, 0.0
        %1113 = vadd.xlane.f32.xlu0 %v1112
        %v1114 = vpop.xlane.xlu0 %1113
        %v1115 = vmul.f32 %v1114, %v1108
        %v1116 = vadd.f32 %v1115, 1e-05
        %v1117 = vrsqrt.pop %v1116
        %v1118 = vmul.f32 %v1117, %v1116
        %v1119 = vmul.f32 %v1118, %v1117
        %v1120 = vmul.f32 0.5, %v1119
        %v1121 = vsub.f32 1.5, %v1120
        %v1122 = vmul.f32 %v1117, %v1121
        %vm1123 = vweird.f32 %v1116
        %vm1124 = vweird.f32 %v1117
        %vm1125 = vmor %vm1123, %vm1124
        %v1126 = vsel %vm1125, %v1117, %v1122
        %v1127 = vmul.f32 %v1110, %v1126
        %v1129 = vperm.slane %v1097, 0
        %v1131 = vmul.f32 %v1127, %v1129
        %v1133 = vperm.slane %v1098, 0
        %v1135 = vadd.f32 %v1131, %v1133
        %v1136 = vld [vmem:[#allocation8] sm:$0xff]
        %v1137 = vld [vmem:[#allocation8 + $0x8] sm:$0xff]
        %v1138 = vld [vmem:[#allocation8 + $0x10] sm:$0xff]
        %v1139 = vld [vmem:[#allocation8 + $0x18] sm:$0xff]
        %v1140 = vld [vmem:[%s13] sm:$0x1]
        %v1142 = vperm.slane %v1140, 0
        %v1145 = vsel %vm651, %v1135, 0
        %1147 = vmatpush.msra.mxu0 0.0
        %1148 = vmatpush.msra.mxu0 0.0
        %1149 = vmatpush.msra.mxu0 0.0
        %1150 = vmatpush.msra.mxu0 0.0
        %1151 = vmatpush.msra.mxu0 0.0
        %1152 = vmatpush.msra.mxu0 0.0
        %1153 = vmatpush.msra.mxu0 0.0
        %1154 = vmatpush.msra.mxu0 0.0
        %1155 = vmatpush.msra.mxu0 0.0
        %1156 = vmatpush.msra.mxu0 0.0
        %1157 = vmatpush.msra.mxu0 0.0
        %1158 = vmatpush.msra.mxu0 0.0
        %1159 = vmatpush.msra.mxu0 %v1139
        %1160 = vmatpush.msra.mxu0 %v1138
        %1161 = vmatpush.msra.mxu0 %v1137
        %1162 = vmatpush.msra.mxu0 %v1136
        %1163 = vmatmul.f32.gmra.mxu0 %v1145
        %v1164 = vpop.f32.mrf.mxu0
        %v1165 = vadd.f32 %v1142, %v1164
        %1166 = vdwg.mxu0
        %v1167 = vmax.f32 %v1165, 0.0
        %v1168 = vld [vmem:[%s14] sm:$0xff]
        %v1169 = vld [vmem:[%s14 + $0x8] sm:$0xff]
        %v1170 = vld [vmem:[%s14 + $0x10] sm:$0xff]
        %v1171 = vld [vmem:[%s14 + $0x18] sm:$0xff]
        %v1172 = vld [vmem:[%s14 + $0x20] sm:$0xff]
        %v1173 = vld [vmem:[%s14 + $0x28] sm:$0xff]
        %v1174 = vld [vmem:[%s14 + $0x30] sm:$0xff]
        %v1175 = vld [vmem:[%s14 + $0x38] sm:$0xff]
        %v1176 = vld [vmem:[%s15] sm:$0x1]
        %v1178 = vperm.slane %v1176, 0
        %vm1180 = vcmask 523264
        %v1182 = vsel %vm1180, %v1167, 0
        %1184 = vmatpush.msra.mxu0 0.0
        %1185 = vmatpush.msra.mxu0 0.0
        %1186 = vmatpush.msra.mxu0 0.0
        %1187 = vmatpush.msra.mxu0 0.0
        %1188 = vmatpush.msra.mxu0 0.0
        %1189 = vmatpush.msra.mxu0 0.0
        %1190 = vmatpush.msra.mxu0 0.0
        %1191 = vmatpush.msra.mxu0 0.0
        %1192 = vmatpush.msra.mxu0 %v1175
        %1193 = vmatpush.msra.mxu0 %v1174
        %1194 = vmatpush.msra.mxu0 %v1173
        %1195 = vmatpush.msra.mxu0 %v1172
        %1196 = vmatpush.msra.mxu0 %v1171
        %1197 = vmatpush.msra.mxu0 %v1170
        %1198 = vmatpush.msra.mxu0 %v1169
        %1199 = vmatpush.msra.mxu0 %v1168
        %1200 = vmatmul.f32.gmra.mxu0 %v1182
        %v1201 = vpop.f32.mrf.mxu0
        %v1202 = vadd.f32 %v1178, %v1201
        %1203 = vdwg.mxu0
        %v1204 = vadd.f32 %v1135, %v1202
        %v1205 = vld [vmem:[%s16] sm:$0x1]
        %v1206 = vld [vmem:[%s17] sm:$0x1]
        %v1207 = vsel %vm651, %v1204, 0.0
        %1208 = vadd.xlane.f32.xlu0 %v1207
        %v1209 = vpop.xlane.xlu0 %1208
        %v1210 = vmul.f32 %v1209, %v1108
        %v1211 = vsub.f32 %v1204, %v1210
        %v1212 = vmul.f32 %v1211, %v1211
        %v1213 = vsel %vm651, %v1212, 0.0
        %1214 = vadd.xlane.f32.xlu0 %v1213
        %v1215 = vpop.xlane.xlu0 %1214
        %v1216 = vmul.f32 %v1215, %v1108
        %v1217 = vadd.f32 %v1216, 1e-05
        %v1218 = vrsqrt.pop %v1217
        %v1219 = vmul.f32 %v1218, %v1217
        %v1220 = vmul.f32 %v1219, %v1218
        %v1221 = vmul.f32 0.5, %v1220
        %v1222 = vsub.f32 1.5, %v1221
        %v1223 = vmul.f32 %v1218, %v1222
        %vm1224 = vweird.f32 %v1217
        %vm1225 = vweird.f32 %v1218
        %vm1226 = vmor %vm1224, %vm1225
        %v1227 = vsel %vm1226, %v1218, %v1223
        %v1228 = vmul.f32 %v1211, %v1227
        %v1230 = vperm.slane %v1205, 0
        %v1232 = vmul.f32 %v1228, %v1230
        %v1234 = vperm.slane %v1206, 0
        %v1236 = vadd.f32 %v1232, %v1234
        %1237 = vst.msk [vmem:[%s640] sm:$0xff] %vm651, %v1236
        %s1238 = sand.u32 %s428, 1
        %s1239 = scalar_lea.sflag [#allocation4], %s1238
        %s1240 = sand.u32 %s428, 1
        %s1241 = smul.addr %s1240, 8
        %s1242 = scalar_lea.vmem [#allocation10], %s1241
        // Predicated region
        $region109: #{tpu_custom_call.1} parent=91 // pred_check
          %p1243 = pneg %p438
        $region110: #{tpu_custom_call.1} parent=91 // pred_check_branch
          %1245 = sbr.rel (%p1243) target = $region112
        $region111: #{tpu_custom_call.1} parent=91 // pred_region
          %1247 = vsyncadd %s1239, 0
          %s1248 = smul.addr %s37, 8
          %s1249 = scalar_lea.hbm %s18, %s1248
          %s1251 = sshll.u32 %s1242, 4
          %s1252 = int_to_ptr.vmem [resolvable:$true] %s1251
          %s1253 = sshll.u32 %s1249, 4
          %s1254 = int_to_ptr.hbm [resolvable:$true] %s1253
          %1256 = dma.vmem_to_hbm [thread:$0]  %s1252, 128, %s1254, %s1239
        $region112: #{tpu_custom_call.1} parent=91 // pred_fallthru
          _
      $region92: #{tpu_custom_call.1} parent=5 // pred_fallthru
        _
      %p1257 = scmp.le.s32.totalorder 2, %s32
      // Predicated region
      $region113: #{tpu_custom_call.1} parent=5 // pred_check
        %p1258 = pneg %p1257
      $region114: #{tpu_custom_call.1} parent=5 // pred_check_branch
        %1260 = sbr.rel (%p1258) target = $region116
      $region115: #{tpu_custom_call.1} parent=5 // pred_region
        %s1261 = ssub.s32 %s32, 2
        // Predicated region
        $region117: #{tpu_custom_call.1} parent=115 // pred_check
          %p1262 = pneg %p444
        $region118: #{tpu_custom_call.1} parent=115 // pred_check_branch
          %1264 = sbr.rel (%p1262) target = $region120
        $region119: #{tpu_custom_call.1} parent=115 // pred_region
          %s1265 = sand.u32 %s429, 1
          %s1266 = scalar_lea.sflag [#allocation4], %s1265
          %s1267 = sand.u32 %s429, 1
          %s1268 = smul.addr %s1267, 8
          %s1269 = scalar_lea.vmem [#allocation10], %s1268
          %1271 = dma.done %s1266, 128
        $region120: #{tpu_custom_call.1} parent=115 // pred_fallthru
          _
      $region116: #{tpu_custom_call.1} parent=5 // pred_fallthru
        _
    $region6: #{tpu_custom_call.1} parent=1 // loop_footer
      %s36 = sadd.s32 1, %s32
    $region7: #{tpu_custom_call.1} parent=1 // loop_footer_branch
      %31 = sbr.rel target = $region3
    $region8: #{tpu_custom_call.1} parent=1 // loop_exit
      _
    %1272 = vsyncpa [#allocation3], 1
    %s1273 = scalar_lea.sflag [#allocation3], 1
    %1274 = vsyncpa %s1273, 1
    %1275 = vsyncpa [#allocation6], 1
    %1276 = vsyncpa [#allocation9], 1
    %1277 = vsyncpa [#allocation4], 1
    %s1278 = scalar_lea.sflag [#allocation4], 1
    %1279 = vsyncpa %s1278, 1

</llo_original>
